<compile_context>
chip_gen: v7x
topology: tpu7x:2x2x1
jax: 0.10.0
libtpu: 0.0.40
codegen_flags: <defaults>
</compile_context>

<pallas_src>
import functools

import jax
import jax.numpy as jnp
from jax.experimental import pallas as pl
from jax.experimental.pallas import tpu as pltpu


def _round_up(x, m):
    return (x + m - 1) // m * m


# ---------------------------------------------------------------------------
# Fused BasicBlock kernel (one batch element per grid step)
# ---------------------------------------------------------------------------
def _basic_block_kernel(mask_ref, x_ref, w1_ref, s1_ref, b1_ref,
                        w2_ref, s2_ref, b2_ref, o_ref, h_ref, *, W):
    # mask_ref : (9, 1, HWp) f32   per-tap validity masks (conv halo + lane-pad)
    # x_ref    : (1, C, HWp) f32   flattened NCHW input (lane axis = H*W padded to 128)
    # w*_ref   : (9, C, C)  bf16   conv weights, one (Cout, Cin) slab per 3x3 tap
    # s*/b*_ref: (C, 1)     f32    folded BN scale / bias
    # o_ref    : (1, C, HWp) f32   output (lane-dense)
    # h_ref    : (C, HWp)   f32    VMEM scratch for relu(bn1(conv1(x)))
    C = w1_ref.shape[1]
    HWp = x_ref.shape[2]

    def conv_bn(read_src, w_ref, s_ref, b_ref):
        # 3x3 / stride-1 / pad-1 conv as 9 accumulating MXU matmuls.  Spatial shifts
        # are static lane rolls (XLU); out-of-bounds taps are zeroed with precomputed
        # masks (f32 math — v5e VPU has no bf16 — cast only the matmul operand).
        acc = None
        for kh in range(3):
            for kw in range(3):
                t = kh * 3 + kw
                delta = (kh - 1) * W + (kw - 1)
                a = read_src()                         # (C, HWp) f32, re-read per tap
                if delta != 0:
                    a = pltpu.roll(a, shift=(-delta) % HWp, axis=1)
                if t != 4:                             # center-tap mask is all ones
                    a = a * mask_ref[t]
                part = jax.lax.dot_general(
                    w_ref[t], a.astype(jnp.bfloat16),
                    dimension_numbers=(((1,), (0,)), ((), ())),
                    preferred_element_type=jnp.float32)
                acc = part if acc is None else acc + part
        return acc * s_ref[...] + b_ref[...]           # folded BN, f32 epilogue

    # conv1 -> bn1 -> relu   (h lives only in the VMEM scratch)
    h_ref[...] = jnp.maximum(conv_bn(lambda: x_ref[0], w1_ref, s1_ref, b1_ref), 0.0)

    # conv2 -> bn2 -> +residual -> relu   (residual = x tile re-read from VMEM)
    y = conv_bn(lambda: h_ref[...], w2_ref, s2_ref, b2_ref) + x_ref[0]
    o_ref[0] = jnp.maximum(y, 0.0).astype(o_ref.dtype)


# ---------------------------------------------------------------------------
# Wrapper
# ---------------------------------------------------------------------------
def _make_tap_masks(H, W, HWp):
    """(9, 1, HWp) f32 validity mask per 3x3 tap (1 = in-bounds, 0 = halo/pad)."""
    HW = H * W
    row = jnp.arange(HW, dtype=jnp.int32) // W
    col = jnp.arange(HW, dtype=jnp.int32) % W
    masks = []
    for kh in range(3):
        for kw in range(3):
            dy, dx = kh - 1, kw - 1
            ok = ((row + dy >= 0) & (row + dy < H) &
                  (col + dx >= 0) & (col + dx < W))
            masks.append(ok.astype(jnp.float32))
    m = jnp.stack(masks, axis=0)                       # (9, HW)
    if HWp != HW:
        m = jnp.pad(m, ((0, 0), (0, HWp - HW)))        # pad columns masked everywhere
    return m.reshape(9, 1, HWp)


def basic_block_forward(x_nchw, kp):
    """Fused BasicBlock forward (stride=1, no downsample).  NCHW in, NCHW out."""
    N, C, H, W = x_nchw.shape
    HW = H * W
    HWp = _round_up(HW, 128)       # lane-dense output stores / MXU N-dimension

    x_flat = x_nchw.reshape(N, C, HW)                  # contiguous (free) reshape
    if HWp != HW:
        # TODO(synk): fold this lane pad/slice into the kernel for real ResNet sizes.
        x_flat = jnp.pad(x_flat, ((0, 0), (0, 0), (0, HWp - HW)))

    masks = _make_tap_masks(H, W, HWp)
    kernel = functools.partial(_basic_block_kernel, W=W)

    flops = N * 2 * (2 * 9 * C * C * HW)               # two 3x3 convs
    bytes_accessed = (2 * N * C * HWp * 4              # x in + out
                      + 2 * 9 * C * C * 2              # bf16 weights
                      + 9 * HWp * 4 + 4 * C * 4)       # masks + BN params

    out_flat = pl.pallas_call(
        kernel,
        out_shape=jax.ShapeDtypeStruct((N, C, HWp), x_nchw.dtype),
        grid_spec=pltpu.PrefetchScalarGridSpec(
            num_scalar_prefetch=0,
            grid=(N,),
            in_specs=[
                pl.BlockSpec((9, 1, HWp), lambda n: (0, 0, 0)),   # tap masks
                pl.BlockSpec((1, C, HWp), lambda n: (n, 0, 0)),   # x
                pl.BlockSpec((9, C, C), lambda n: (0, 0, 0)),     # w1 (bf16, per-tap)
                pl.BlockSpec((C, 1), lambda n: (0, 0)),           # bn1 scale
                pl.BlockSpec((C, 1), lambda n: (0, 0)),           # bn1 bias
                pl.BlockSpec((9, C, C), lambda n: (0, 0, 0)),     # w2 (bf16, per-tap)
                pl.BlockSpec((C, 1), lambda n: (0, 0)),           # bn2 scale
                pl.BlockSpec((C, 1), lambda n: (0, 0)),           # bn2 bias
            ],
            out_specs=pl.BlockSpec((1, C, HWp), lambda n: (n, 0, 0)),
            scratch_shapes=[pltpu.VMEM((C, HWp), jnp.float32)],   # h scratch
        ),
        compiler_params=pltpu.CompilerParams(
            dimension_semantics=("parallel",),   # batch images split across TCs (v7x)
            vmem_limit_bytes=32 * 1024 * 1024,   # small working set; safe on v5e/v6e/v7x
        ),
        cost_estimate=pl.CostEstimate(flops=flops, transcendentals=0,
                                      bytes_accessed=bytes_accessed),
    )(masks, x_flat, kp["w1"], kp["scale1"], kp["bias1"],
      kp["w2"], kp["scale2"], kp["bias2"])

    if HWp != HW:
        out_flat = out_flat[:, :, :HW]
    return out_flat.reshape(N, C, H, W)


# ---------------------------------------------------------------------------
# Parameter construction / packing
# ---------------------------------------------------------------------------
def make_raw_params(key, inplanes, planes):
    assert inplanes == planes, "no-downsample BasicBlock needs inplanes == planes"
    k1, k2, k3, k4 = jax.random.split(key, 4)
    w1 = 0.1 * jax.random.normal(k1, (planes, inplanes, 3, 3), jnp.float32)   # OIHW
    w2 = 0.1 * jax.random.normal(k2, (planes, planes, 3, 3), jnp.float32)
    gamma1 = 1.0 + 0.1 * jax.random.normal(k3, (planes,), jnp.float32)
    beta1 = 0.1 * jax.random.normal(k4, (planes,), jnp.float32)
    mean1 = jnp.zeros((planes,), jnp.float32)
    var1 = jnp.ones((planes,), jnp.float32)
    gamma2 = 1.0 - 0.05 * gamma1
    beta2 = -0.5 * beta1
    mean2 = jnp.zeros((planes,), jnp.float32)
    var2 = jnp.ones((planes,), jnp.float32)
    return dict(w1=w1, w2=w2,
                gamma1=gamma1, beta1=beta1, mean1=mean1, var1=var1,
                gamma2=gamma2, beta2=beta2, mean2=mean2, var2=var2)


def _fold_bn(gamma, beta, mean, var, eps=1e-5):
    scale = gamma / jnp.sqrt(var + eps)
    bias = beta - mean * scale
    return scale, bias


def _pack_conv_weight(w_oihw):
    # OIHW -> (9, Cout, Cin): one (Cout, Cin) weight slab per 3x3 tap (t = kh*3 + kw),
    # bf16 operands for the MXU.
    Cout, Cin, KH, KW = w_oihw.shape
    return (jnp.transpose(w_oihw, (2, 3, 0, 1))
            .reshape(KH * KW, Cout, Cin)
            .astype(jnp.bfloat16))


def pack_params(raw):
    s1, b1 = _fold_bn(raw["gamma1"], raw["beta1"], raw["mean1"], raw["var1"])
    s2, b2 = _fold_bn(raw["gamma2"], raw["beta2"], raw["mean2"], raw["var2"])
    return dict(
        w1=_pack_conv_weight(raw["w1"]),
        w2=_pack_conv_weight(raw["w2"]),
        scale1=s1.reshape(-1, 1), bias1=b1.reshape(-1, 1),
        scale2=s2.reshape(-1, 1), bias2=b2.reshape(-1, 1),
    )


# ---------------------------------------------------------------------------
# Pure-JAX reference (sanity check)
# ---------------------------------------------------------------------------
def _ref_forward(x_nchw, raw, eps=1e-5):
    def conv(inp, w):
        return jax.lax.conv_general_dilated(
            inp, w, window_strides=(1, 1), padding="SAME",
            dimension_numbers=("NCHW", "OIHW", "NCHW"))

    def bn(h, gamma, beta, mean, var):
        scale = gamma / jnp.sqrt(var + eps)
        bias = beta - mean * scale
        return h * scale.reshape(1, -1, 1, 1) + bias.reshape(1, -1, 1, 1)

    h = jnp.maximum(bn(conv(x_nchw, raw["w1"]), raw["gamma1"], raw["beta1"],
                       raw["mean1"], raw["var1"]), 0.0)
    o = bn(conv(h, raw["w2"]), raw["gamma2"], raw["beta2"],
           raw["mean2"], raw["var2"]) + x_nchw
    return jnp.maximum(o, 0.0)


if __name__ == "__main__":
    key = jax.random.PRNGKey(0)
    kx, kp = jax.random.split(key)

    N, C, H, W = 2, 4, 16, 16            # inplanes = planes = 4, stride = 1
    x = jax.random.normal(kx, (N, C, H, W), jnp.float32)
    raw = make_raw_params(kp, C, C)
    kparams = pack_params(raw)

    out = jax.block_until_ready(jax.jit(basic_block_forward)(x, kparams))
    ref = jax.block_until_ready(_ref_forward(x, raw))

    assert out.shape == (N, C, H, W)
    err = float(jnp.max(jnp.abs(out - ref)))
    assert err < 2e-2, f"mismatch vs reference: max abs err = {err}"
    print("KERNEL_OK")
</pallas_src>

<mosaic_0001>
module attributes {stable_mosaic.version = 11 : i64} {
  func.func @_basic_block_kernel(%arg0: i32, %arg1: memref<9x1x256xf32, #tpu.memory_space<vmem>>, %arg2: memref<1x4x256xf32, #tpu.memory_space<vmem>>, %arg3: memref<9x4x4xbf16, #tpu.memory_space<vmem>>, %arg4: memref<4x1xf32, #tpu.memory_space<vmem>>, %arg5: memref<4x1xf32, #tpu.memory_space<vmem>>, %arg6: memref<9x4x4xbf16, #tpu.memory_space<vmem>>, %arg7: memref<4x1xf32, #tpu.memory_space<vmem>>, %arg8: memref<4x1xf32, #tpu.memory_space<vmem>>, %arg9: memref<1x4x256xf32, #tpu.memory_space<vmem>>, %arg10: memref<4x256xf32, #tpu.memory_space<vmem>>) attributes {dimension_semantics = [#tpu.dimension_semantics<parallel>], iteration_bounds = array<i64: 2>, scalar_prefetch = 0 : i64, scratch_operands = 1 : i64, tpu.core_type = #tpu.core_type<tc>, window_params = [{pipeline_mode = #tpu.pipeline_mode<synchronous>, transform_indices = @transform_0, window_bounds = array<i64: 9, 1, 256>}, {transform_indices = @transform_1, window_bounds = array<i64: 1, 4, 256>}, {pipeline_mode = #tpu.pipeline_mode<synchronous>, transform_indices = @transform_2, window_bounds = array<i64: 9, 4, 4>}, {pipeline_mode = #tpu.pipeline_mode<synchronous>, transform_indices = @transform_3, window_bounds = array<i64: 4, 1>}, {pipeline_mode = #tpu.pipeline_mode<synchronous>, transform_indices = @transform_4, window_bounds = array<i64: 4, 1>}, {pipeline_mode = #tpu.pipeline_mode<synchronous>, transform_indices = @transform_5, window_bounds = array<i64: 9, 4, 4>}, {pipeline_mode = #tpu.pipeline_mode<synchronous>, transform_indices = @transform_6, window_bounds = array<i64: 4, 1>}, {pipeline_mode = #tpu.pipeline_mode<synchronous>, transform_indices = @transform_7, window_bounds = array<i64: 4, 1>}, {transform_indices = @transform_8, window_bounds = array<i64: 1, 4, 256>}]} {
    %c0 = arith.constant 0 : index
    %c0_0 = arith.constant 0 : index
    %c0_1 = arith.constant 0 : index
    %0 = vector.load %arg2[%c0, %c0_0, %c0_1] : memref<1x4x256xf32, #tpu.memory_space<vmem>>, vector<1x4x256xf32>
    %1 = vector.shape_cast %0 : vector<1x4x256xf32> to vector<4x256xf32>
    %c17_i32 = arith.constant 17 : i32
    %2 = tpu.dynamic_rotate %1 by %c17_i32 dim 1 : vector<4x256xf32>, i32 -> vector<4x256xf32>
    %c0_2 = arith.constant 0 : index
    %c0_3 = arith.constant 0 : index
    %c0_4 = arith.constant 0 : index
    %3 = vector.load %arg1[%c0_2, %c0_3, %c0_4] : memref<9x1x256xf32, #tpu.memory_space<vmem>>, vector<1x1x256xf32>
    %4 = vector.shape_cast %3 : vector<1x1x256xf32> to vector<1x256xf32>
    %5 = vector.broadcast %4 : vector<1x256xf32> to vector<4x256xf32>
    %6 = arith.mulf %2, %5 : vector<4x256xf32>
    %c0_5 = arith.constant 0 : index
    %c0_6 = arith.constant 0 : index
    %c0_7 = arith.constant 0 : index
    %7 = vector.load %arg3[%c0_5, %c0_6, %c0_7] : memref<9x4x4xbf16, #tpu.memory_space<vmem>>, vector<1x4x4xbf16>
    %8 = vector.shape_cast %7 : vector<1x4x4xbf16> to vector<4x4xbf16>
    %9 = arith.truncf %6 : vector<4x256xf32> to vector<4x256xbf16>
    %cst = arith.constant dense<0.000000e+00> : vector<4x256xf32>
    %10 = tpu.matmul %8, %9, %cst {dimension_numbers = #tpu.dot_dimension_numbers<[1], [0], [0], [1], [0, 0, 1, 1], [], []>} : vector<4x4xbf16>, vector<4x256xbf16>, vector<4x256xf32> -> vector<4x256xf32>
    %c0_8 = arith.constant 0 : index
    %c0_9 = arith.constant 0 : index
    %c0_10 = arith.constant 0 : index
    %11 = vector.load %arg2[%c0_8, %c0_9, %c0_10] : memref<1x4x256xf32, #tpu.memory_space<vmem>>, vector<1x4x256xf32>
    %12 = vector.shape_cast %11 : vector<1x4x256xf32> to vector<4x256xf32>
    %c16_i32 = arith.constant 16 : i32
    %13 = tpu.dynamic_rotate %12 by %c16_i32 dim 1 : vector<4x256xf32>, i32 -> vector<4x256xf32>
    %c1 = arith.constant 1 : index
    %c0_11 = arith.constant 0 : index
    %c0_12 = arith.constant 0 : index
    %14 = vector.load %arg1[%c1, %c0_11, %c0_12] : memref<9x1x256xf32, #tpu.memory_space<vmem>>, vector<1x1x256xf32>
    %15 = vector.shape_cast %14 : vector<1x1x256xf32> to vector<1x256xf32>
    %16 = vector.broadcast %15 : vector<1x256xf32> to vector<4x256xf32>
    %17 = arith.mulf %13, %16 : vector<4x256xf32>
    %c1_13 = arith.constant 1 : index
    %c0_14 = arith.constant 0 : index
    %c0_15 = arith.constant 0 : index
    %18 = vector.load %arg3[%c1_13, %c0_14, %c0_15] : memref<9x4x4xbf16, #tpu.memory_space<vmem>>, vector<1x4x4xbf16>
    %19 = vector.shape_cast %18 : vector<1x4x4xbf16> to vector<4x4xbf16>
    %20 = arith.truncf %17 : vector<4x256xf32> to vector<4x256xbf16>
    %cst_16 = arith.constant dense<0.000000e+00> : vector<4x256xf32>
    %21 = tpu.matmul %19, %20, %cst_16 {dimension_numbers = #tpu.dot_dimension_numbers<[1], [0], [0], [1], [0, 0, 1, 1], [], []>} : vector<4x4xbf16>, vector<4x256xbf16>, vector<4x256xf32> -> vector<4x256xf32>
    %22 = arith.addf %10, %21 : vector<4x256xf32>
    %c0_17 = arith.constant 0 : index
    %c0_18 = arith.constant 0 : index
    %c0_19 = arith.constant 0 : index
    %23 = vector.load %arg2[%c0_17, %c0_18, %c0_19] : memref<1x4x256xf32, #tpu.memory_space<vmem>>, vector<1x4x256xf32>
    %24 = vector.shape_cast %23 : vector<1x4x256xf32> to vector<4x256xf32>
    %c15_i32 = arith.constant 15 : i32
    %25 = tpu.dynamic_rotate %24 by %c15_i32 dim 1 : vector<4x256xf32>, i32 -> vector<4x256xf32>
    %c2 = arith.constant 2 : index
    %c0_20 = arith.constant 0 : index
    %c0_21 = arith.constant 0 : index
    %26 = vector.load %arg1[%c2, %c0_20, %c0_21] : memref<9x1x256xf32, #tpu.memory_space<vmem>>, vector<1x1x256xf32>
    %27 = vector.shape_cast %26 : vector<1x1x256xf32> to vector<1x256xf32>
    %28 = vector.broadcast %27 : vector<1x256xf32> to vector<4x256xf32>
    %29 = arith.mulf %25, %28 : vector<4x256xf32>
    %c2_22 = arith.constant 2 : index
    %c0_23 = arith.constant 0 : index
    %c0_24 = arith.constant 0 : index
    %30 = vector.load %arg3[%c2_22, %c0_23, %c0_24] : memref<9x4x4xbf16, #tpu.memory_space<vmem>>, vector<1x4x4xbf16>
    %31 = vector.shape_cast %30 : vector<1x4x4xbf16> to vector<4x4xbf16>
    %32 = arith.truncf %29 : vector<4x256xf32> to vector<4x256xbf16>
    %cst_25 = arith.constant dense<0.000000e+00> : vector<4x256xf32>
    %33 = tpu.matmul %31, %32, %cst_25 {dimension_numbers = #tpu.dot_dimension_numbers<[1], [0], [0], [1], [0, 0, 1, 1], [], []>} : vector<4x4xbf16>, vector<4x256xbf16>, vector<4x256xf32> -> vector<4x256xf32>
    %34 = arith.addf %22, %33 : vector<4x256xf32>
    %c0_26 = arith.constant 0 : index
    %c0_27 = arith.constant 0 : index
    %c0_28 = arith.constant 0 : index
    %35 = vector.load %arg2[%c0_26, %c0_27, %c0_28] : memref<1x4x256xf32, #tpu.memory_space<vmem>>, vector<1x4x256xf32>
    %36 = vector.shape_cast %35 : vector<1x4x256xf32> to vector<4x256xf32>
    %c1_i32 = arith.constant 1 : i32
    %37 = tpu.dynamic_rotate %36 by %c1_i32 dim 1 : vector<4x256xf32>, i32 -> vector<4x256xf32>
    %c3 = arith.constant 3 : index
    %c0_29 = arith.constant 0 : index
    %c0_30 = arith.constant 0 : index
    %38 = vector.load %arg1[%c3, %c0_29, %c0_30] : memref<9x1x256xf32, #tpu.memory_space<vmem>>, vector<1x1x256xf32>
    %39 = vector.shape_cast %38 : vector<1x1x256xf32> to vector<1x256xf32>
    %40 = vector.broadcast %39 : vector<1x256xf32> to vector<4x256xf32>
    %41 = arith.mulf %37, %40 : vector<4x256xf32>
    %c3_31 = arith.constant 3 : index
    %c0_32 = arith.constant 0 : index
    %c0_33 = arith.constant 0 : index
    %42 = vector.load %arg3[%c3_31, %c0_32, %c0_33] : memref<9x4x4xbf16, #tpu.memory_space<vmem>>, vector<1x4x4xbf16>
    %43 = vector.shape_cast %42 : vector<1x4x4xbf16> to vector<4x4xbf16>
    %44 = arith.truncf %41 : vector<4x256xf32> to vector<4x256xbf16>
    %cst_34 = arith.constant dense<0.000000e+00> : vector<4x256xf32>
    %45 = tpu.matmul %43, %44, %cst_34 {dimension_numbers = #tpu.dot_dimension_numbers<[1], [0], [0], [1], [0, 0, 1, 1], [], []>} : vector<4x4xbf16>, vector<4x256xbf16>, vector<4x256xf32> -> vector<4x256xf32>
    %46 = arith.addf %34, %45 : vector<4x256xf32>
    %c0_35 = arith.constant 0 : index
    %c0_36 = arith.constant 0 : index
    %c0_37 = arith.constant 0 : index
    %47 = vector.load %arg2[%c0_35, %c0_36, %c0_37] : memref<1x4x256xf32, #tpu.memory_space<vmem>>, vector<1x4x256xf32>
    %48 = vector.shape_cast %47 : vector<1x4x256xf32> to vector<4x256xf32>
    %c4 = arith.constant 4 : index
    %c0_38 = arith.constant 0 : index
    %c0_39 = arith.constant 0 : index
    %49 = vector.load %arg3[%c4, %c0_38, %c0_39] : memref<9x4x4xbf16, #tpu.memory_space<vmem>>, vector<1x4x4xbf16>
    %50 = vector.shape_cast %49 : vector<1x4x4xbf16> to vector<4x4xbf16>
    %51 = arith.truncf %48 : vector<4x256xf32> to vector<4x256xbf16>
    %cst_40 = arith.constant dense<0.000000e+00> : vector<4x256xf32>
    %52 = tpu.matmul %50, %51, %cst_40 {dimension_numbers = #tpu.dot_dimension_numbers<[1], [0], [0], [1], [0, 0, 1, 1], [], []>} : vector<4x4xbf16>, vector<4x256xbf16>, vector<4x256xf32> -> vector<4x256xf32>
    %53 = arith.addf %46, %52 : vector<4x256xf32>
    %c0_41 = arith.constant 0 : index
    %c0_42 = arith.constant 0 : index
    %c0_43 = arith.constant 0 : index
    %54 = vector.load %arg2[%c0_41, %c0_42, %c0_43] : memref<1x4x256xf32, #tpu.memory_space<vmem>>, vector<1x4x256xf32>
    %55 = vector.shape_cast %54 : vector<1x4x256xf32> to vector<4x256xf32>
    %c255_i32 = arith.constant 255 : i32
    %56 = tpu.dynamic_rotate %55 by %c255_i32 dim 1 : vector<4x256xf32>, i32 -> vector<4x256xf32>
    %c5 = arith.constant 5 : index
    %c0_44 = arith.constant 0 : index
    %c0_45 = arith.constant 0 : index
    %57 = vector.load %arg1[%c5, %c0_44, %c0_45] : memref<9x1x256xf32, #tpu.memory_space<vmem>>, vector<1x1x256xf32>
    %58 = vector.shape_cast %57 : vector<1x1x256xf32> to vector<1x256xf32>
    %59 = vector.broadcast %58 : vector<1x256xf32> to vector<4x256xf32>
    %60 = arith.mulf %56, %59 : vector<4x256xf32>
    %c5_46 = arith.constant 5 : index
    %c0_47 = arith.constant 0 : index
    %c0_48 = arith.constant 0 : index
    %61 = vector.load %arg3[%c5_46, %c0_47, %c0_48] : memref<9x4x4xbf16, #tpu.memory_space<vmem>>, vector<1x4x4xbf16>
    %62 = vector.shape_cast %61 : vector<1x4x4xbf16> to vector<4x4xbf16>
    %63 = arith.truncf %60 : vector<4x256xf32> to vector<4x256xbf16>
    %cst_49 = arith.constant dense<0.000000e+00> : vector<4x256xf32>
    %64 = tpu.matmul %62, %63, %cst_49 {dimension_numbers = #tpu.dot_dimension_numbers<[1], [0], [0], [1], [0, 0, 1, 1], [], []>} : vector<4x4xbf16>, vector<4x256xbf16>, vector<4x256xf32> -> vector<4x256xf32>
    %65 = arith.addf %53, %64 : vector<4x256xf32>
    %c0_50 = arith.constant 0 : index
    %c0_51 = arith.constant 0 : index
    %c0_52 = arith.constant 0 : index
    %66 = vector.load %arg2[%c0_50, %c0_51, %c0_52] : memref<1x4x256xf32, #tpu.memory_space<vmem>>, vector<1x4x256xf32>
    %67 = vector.shape_cast %66 : vector<1x4x256xf32> to vector<4x256xf32>
    %c241_i32 = arith.constant 241 : i32
    %68 = tpu.dynamic_rotate %67 by %c241_i32 dim 1 : vector<4x256xf32>, i32 -> vector<4x256xf32>
    %c6 = arith.constant 6 : index
    %c0_53 = arith.constant 0 : index
    %c0_54 = arith.constant 0 : index
    %69 = vector.load %arg1[%c6, %c0_53, %c0_54] : memref<9x1x256xf32, #tpu.memory_space<vmem>>, vector<1x1x256xf32>
    %70 = vector.shape_cast %69 : vector<1x1x256xf32> to vector<1x256xf32>
    %71 = vector.broadcast %70 : vector<1x256xf32> to vector<4x256xf32>
    %72 = arith.mulf %68, %71 : vector<4x256xf32>
    %c6_55 = arith.constant 6 : index
    %c0_56 = arith.constant 0 : index
    %c0_57 = arith.constant 0 : index
    %73 = vector.load %arg3[%c6_55, %c0_56, %c0_57] : memref<9x4x4xbf16, #tpu.memory_space<vmem>>, vector<1x4x4xbf16>
    %74 = vector.shape_cast %73 : vector<1x4x4xbf16> to vector<4x4xbf16>
    %75 = arith.truncf %72 : vector<4x256xf32> to vector<4x256xbf16>
    %cst_58 = arith.constant dense<0.000000e+00> : vector<4x256xf32>
    %76 = tpu.matmul %74, %75, %cst_58 {dimension_numbers = #tpu.dot_dimension_numbers<[1], [0], [0], [1], [0, 0, 1, 1], [], []>} : vector<4x4xbf16>, vector<4x256xbf16>, vector<4x256xf32> -> vector<4x256xf32>
    %77 = arith.addf %65, %76 : vector<4x256xf32>
    %c0_59 = arith.constant 0 : index
    %c0_60 = arith.constant 0 : index
    %c0_61 = arith.constant 0 : index
    %78 = vector.load %arg2[%c0_59, %c0_60, %c0_61] : memref<1x4x256xf32, #tpu.memory_space<vmem>>, vector<1x4x256xf32>
    %79 = vector.shape_cast %78 : vector<1x4x256xf32> to vector<4x256xf32>
    %c240_i32 = arith.constant 240 : i32
    %80 = tpu.dynamic_rotate %79 by %c240_i32 dim 1 : vector<4x256xf32>, i32 -> vector<4x256xf32>
    %c7 = arith.constant 7 : index
    %c0_62 = arith.constant 0 : index
    %c0_63 = arith.constant 0 : index
    %81 = vector.load %arg1[%c7, %c0_62, %c0_63] : memref<9x1x256xf32, #tpu.memory_space<vmem>>, vector<1x1x256xf32>
    %82 = vector.shape_cast %81 : vector<1x1x256xf32> to vector<1x256xf32>
    %83 = vector.broadcast %82 : vector<1x256xf32> to vector<4x256xf32>
    %84 = arith.mulf %80, %83 : vector<4x256xf32>
    %c7_64 = arith.constant 7 : index
    %c0_65 = arith.constant 0 : index
    %c0_66 = arith.constant 0 : index
    %85 = vector.load %arg3[%c7_64, %c0_65, %c0_66] : memref<9x4x4xbf16, #tpu.memory_space<vmem>>, vector<1x4x4xbf16>
    %86 = vector.shape_cast %85 : vector<1x4x4xbf16> to vector<4x4xbf16>
    %87 = arith.truncf %84 : vector<4x256xf32> to vector<4x256xbf16>
    %cst_67 = arith.constant dense<0.000000e+00> : vector<4x256xf32>
    %88 = tpu.matmul %86, %87, %cst_67 {dimension_numbers = #tpu.dot_dimension_numbers<[1], [0], [0], [1], [0, 0, 1, 1], [], []>} : vector<4x4xbf16>, vector<4x256xbf16>, vector<4x256xf32> -> vector<4x256xf32>
    %89 = arith.addf %77, %88 : vector<4x256xf32>
    %c0_68 = arith.constant 0 : index
    %c0_69 = arith.constant 0 : index
    %c0_70 = arith.constant 0 : index
    %90 = vector.load %arg2[%c0_68, %c0_69, %c0_70] : memref<1x4x256xf32, #tpu.memory_space<vmem>>, vector<1x4x256xf32>
    %91 = vector.shape_cast %90 : vector<1x4x256xf32> to vector<4x256xf32>
    %c239_i32 = arith.constant 239 : i32
    %92 = tpu.dynamic_rotate %91 by %c239_i32 dim 1 : vector<4x256xf32>, i32 -> vector<4x256xf32>
    %c8 = arith.constant 8 : index
    %c0_71 = arith.constant 0 : index
    %c0_72 = arith.constant 0 : index
    %93 = vector.load %arg1[%c8, %c0_71, %c0_72] : memref<9x1x256xf32, #tpu.memory_space<vmem>>, vector<1x1x256xf32>
    %94 = vector.shape_cast %93 : vector<1x1x256xf32> to vector<1x256xf32>
    %95 = vector.broadcast %94 : vector<1x256xf32> to vector<4x256xf32>
    %96 = arith.mulf %92, %95 : vector<4x256xf32>
    %c8_73 = arith.constant 8 : index
    %c0_74 = arith.constant 0 : index
    %c0_75 = arith.constant 0 : index
    %97 = vector.load %arg3[%c8_73, %c0_74, %c0_75] : memref<9x4x4xbf16, #tpu.memory_space<vmem>>, vector<1x4x4xbf16>
    %98 = vector.shape_cast %97 : vector<1x4x4xbf16> to vector<4x4xbf16>
    %99 = arith.truncf %96 : vector<4x256xf32> to vector<4x256xbf16>
    %cst_76 = arith.constant dense<0.000000e+00> : vector<4x256xf32>
    %100 = tpu.matmul %98, %99, %cst_76 {dimension_numbers = #tpu.dot_dimension_numbers<[1], [0], [0], [1], [0, 0, 1, 1], [], []>} : vector<4x4xbf16>, vector<4x256xbf16>, vector<4x256xf32> -> vector<4x256xf32>
    %101 = arith.addf %89, %100 : vector<4x256xf32>
    %c0_77 = arith.constant 0 : index
    %c0_78 = arith.constant 0 : index
    %102 = vector.load %arg4[%c0_77, %c0_78] : memref<4x1xf32, #tpu.memory_space<vmem>>, vector<4x1xf32>
    %103 = vector.broadcast %102 : vector<4x1xf32> to vector<4x256xf32>
    %104 = arith.mulf %101, %103 : vector<4x256xf32>
    %c0_79 = arith.constant 0 : index
    %c0_80 = arith.constant 0 : index
    %105 = vector.load %arg5[%c0_79, %c0_80] : memref<4x1xf32, #tpu.memory_space<vmem>>, vector<4x1xf32>
    %106 = vector.broadcast %105 : vector<4x1xf32> to vector<4x256xf32>
    %107 = arith.addf %104, %106 : vector<4x256xf32>
    %cst_81 = arith.constant 0.000000e+00 : f32
    %108 = vector.broadcast %cst_81 : f32 to vector<4x256xf32>
    %109 = arith.maximumf %107, %108 : vector<4x256xf32>
    %c0_82 = arith.constant 0 : index
    %c0_83 = arith.constant 0 : index
    %110 = vector.load %arg10[%c0_82, %c0_83] : memref<4x256xf32, #tpu.memory_space<vmem>>, vector<4x256xf32>
    tpu.vector_store %arg10[%c0_82, %c0_83], %109 {strides = array<i32>} : memref<4x256xf32, #tpu.memory_space<vmem>>, vector<4x256xf32>,
    %c0_84 = arith.constant 0 : index
    %c0_85 = arith.constant 0 : index
    %111 = vector.load %arg10[%c0_84, %c0_85] : memref<4x256xf32, #tpu.memory_space<vmem>>, vector<4x256xf32>
    %c17_i32_86 = arith.constant 17 : i32
    %112 = tpu.dynamic_rotate %111 by %c17_i32_86 dim 1 : vector<4x256xf32>, i32 -> vector<4x256xf32>
    %c0_87 = arith.constant 0 : index
    %c0_88 = arith.constant 0 : index
    %c0_89 = arith.constant 0 : index
    %113 = vector.load %arg1[%c0_87, %c0_88, %c0_89] : memref<9x1x256xf32, #tpu.memory_space<vmem>>, vector<1x1x256xf32>
    %114 = vector.shape_cast %113 : vector<1x1x256xf32> to vector<1x256xf32>
    %115 = vector.broadcast %114 : vector<1x256xf32> to vector<4x256xf32>
    %116 = arith.mulf %112, %115 : vector<4x256xf32>
    %c0_90 = arith.constant 0 : index
    %c0_91 = arith.constant 0 : index
    %c0_92 = arith.constant 0 : index
    %117 = vector.load %arg6[%c0_90, %c0_91, %c0_92] : memref<9x4x4xbf16, #tpu.memory_space<vmem>>, vector<1x4x4xbf16>
    %118 = vector.shape_cast %117 : vector<1x4x4xbf16> to vector<4x4xbf16>
    %119 = arith.truncf %116 : vector<4x256xf32> to vector<4x256xbf16>
    %cst_93 = arith.constant dense<0.000000e+00> : vector<4x256xf32>
    %120 = tpu.matmul %118, %119, %cst_93 {dimension_numbers = #tpu.dot_dimension_numbers<[1], [0], [0], [1], [0, 0, 1, 1], [], []>} : vector<4x4xbf16>, vector<4x256xbf16>, vector<4x256xf32> -> vector<4x256xf32>
    %c0_94 = arith.constant 0 : index
    %c0_95 = arith.constant 0 : index
    %121 = vector.load %arg10[%c0_94, %c0_95] : memref<4x256xf32, #tpu.memory_space<vmem>>, vector<4x256xf32>
    %c16_i32_96 = arith.constant 16 : i32
    %122 = tpu.dynamic_rotate %121 by %c16_i32_96 dim 1 : vector<4x256xf32>, i32 -> vector<4x256xf32>
    %c1_97 = arith.constant 1 : index
    %c0_98 = arith.constant 0 : index
    %c0_99 = arith.constant 0 : index
    %123 = vector.load %arg1[%c1_97, %c0_98, %c0_99] : memref<9x1x256xf32, #tpu.memory_space<vmem>>, vector<1x1x256xf32>
    %124 = vector.shape_cast %123 : vector<1x1x256xf32> to vector<1x256xf32>
    %125 = vector.broadcast %124 : vector<1x256xf32> to vector<4x256xf32>
    %126 = arith.mulf %122, %125 : vector<4x256xf32>
    %c1_100 = arith.constant 1 : index
    %c0_101 = arith.constant 0 : index
    %c0_102 = arith.constant 0 : index
    %127 = vector.load %arg6[%c1_100, %c0_101, %c0_102] : memref<9x4x4xbf16, #tpu.memory_space<vmem>>, vector<1x4x4xbf16>
    %128 = vector.shape_cast %127 : vector<1x4x4xbf16> to vector<4x4xbf16>
    %129 = arith.truncf %126 : vector<4x256xf32> to vector<4x256xbf16>
    %cst_103 = arith.constant dense<0.000000e+00> : vector<4x256xf32>
    %130 = tpu.matmul %128, %129, %cst_103 {dimension_numbers = #tpu.dot_dimension_numbers<[1], [0], [0], [1], [0, 0, 1, 1], [], []>} : vector<4x4xbf16>, vector<4x256xbf16>, vector<4x256xf32> -> vector<4x256xf32>
    %131 = arith.addf %120, %130 : vector<4x256xf32>
    %c0_104 = arith.constant 0 : index
    %c0_105 = arith.constant 0 : index
    %132 = vector.load %arg10[%c0_104, %c0_105] : memref<4x256xf32, #tpu.memory_space<vmem>>, vector<4x256xf32>
    %c15_i32_106 = arith.constant 15 : i32
    %133 = tpu.dynamic_rotate %132 by %c15_i32_106 dim 1 : vector<4x256xf32>, i32 -> vector<4x256xf32>
    %c2_107 = arith.constant 2 : index
    %c0_108 = arith.constant 0 : index
    %c0_109 = arith.constant 0 : index
    %134 = vector.load %arg1[%c2_107, %c0_108, %c0_109] : memref<9x1x256xf32, #tpu.memory_space<vmem>>, vector<1x1x256xf32>
    %135 = vector.shape_cast %134 : vector<1x1x256xf32> to vector<1x256xf32>
    %136 = vector.broadcast %135 : vector<1x256xf32> to vector<4x256xf32>
    %137 = arith.mulf %133, %136 : vector<4x256xf32>
    %c2_110 = arith.constant 2 : index
    %c0_111 = arith.constant 0 : index
    %c0_112 = arith.constant 0 : index
    %138 = vector.load %arg6[%c2_110, %c0_111, %c0_112] : memref<9x4x4xbf16, #tpu.memory_space<vmem>>, vector<1x4x4xbf16>
    %139 = vector.shape_cast %138 : vector<1x4x4xbf16> to vector<4x4xbf16>
    %140 = arith.truncf %137 : vector<4x256xf32> to vector<4x256xbf16>
    %cst_113 = arith.constant dense<0.000000e+00> : vector<4x256xf32>
    %141 = tpu.matmul %139, %140, %cst_113 {dimension_numbers = #tpu.dot_dimension_numbers<[1], [0], [0], [1], [0, 0, 1, 1], [], []>} : vector<4x4xbf16>, vector<4x256xbf16>, vector<4x256xf32> -> vector<4x256xf32>
    %142 = arith.addf %131, %141 : vector<4x256xf32>
    %c0_114 = arith.constant 0 : index
    %c0_115 = arith.constant 0 : index
    %143 = vector.load %arg10[%c0_114, %c0_115] : memref<4x256xf32, #tpu.memory_space<vmem>>, vector<4x256xf32>
    %c1_i32_116 = arith.constant 1 : i32
    %144 = tpu.dynamic_rotate %143 by %c1_i32_116 dim 1 : vector<4x256xf32>, i32 -> vector<4x256xf32>
    %c3_117 = arith.constant 3 : index
    %c0_118 = arith.constant 0 : index
    %c0_119 = arith.constant 0 : index
    %145 = vector.load %arg1[%c3_117, %c0_118, %c0_119] : memref<9x1x256xf32, #tpu.memory_space<vmem>>, vector<1x1x256xf32>
    %146 = vector.shape_cast %145 : vector<1x1x256xf32> to vector<1x256xf32>
    %147 = vector.broadcast %146 : vector<1x256xf32> to vector<4x256xf32>
    %148 = arith.mulf %144, %147 : vector<4x256xf32>
    %c3_120 = arith.constant 3 : index
    %c0_121 = arith.constant 0 : index
    %c0_122 = arith.constant 0 : index
    %149 = vector.load %arg6[%c3_120, %c0_121, %c0_122] : memref<9x4x4xbf16, #tpu.memory_space<vmem>>, vector<1x4x4xbf16>
    %150 = vector.shape_cast %149 : vector<1x4x4xbf16> to vector<4x4xbf16>
    %151 = arith.truncf %148 : vector<4x256xf32> to vector<4x256xbf16>
    %cst_123 = arith.constant dense<0.000000e+00> : vector<4x256xf32>
    %152 = tpu.matmul %150, %151, %cst_123 {dimension_numbers = #tpu.dot_dimension_numbers<[1], [0], [0], [1], [0, 0, 1, 1], [], []>} : vector<4x4xbf16>, vector<4x256xbf16>, vector<4x256xf32> -> vector<4x256xf32>
    %153 = arith.addf %142, %152 : vector<4x256xf32>
    %c0_124 = arith.constant 0 : index
    %c0_125 = arith.constant 0 : index
    %154 = vector.load %arg10[%c0_124, %c0_125] : memref<4x256xf32, #tpu.memory_space<vmem>>, vector<4x256xf32>
    %c4_126 = arith.constant 4 : index
    %c0_127 = arith.constant 0 : index
    %c0_128 = arith.constant 0 : index
    %155 = vector.load %arg6[%c4_126, %c0_127, %c0_128] : memref<9x4x4xbf16, #tpu.memory_space<vmem>>, vector<1x4x4xbf16>
    %156 = vector.shape_cast %155 : vector<1x4x4xbf16> to vector<4x4xbf16>
    %157 = arith.truncf %154 : vector<4x256xf32> to vector<4x256xbf16>
    %cst_129 = arith.constant dense<0.000000e+00> : vector<4x256xf32>
    %158 = tpu.matmul %156, %157, %cst_129 {dimension_numbers = #tpu.dot_dimension_numbers<[1], [0], [0], [1], [0, 0, 1, 1], [], []>} : vector<4x4xbf16>, vector<4x256xbf16>, vector<4x256xf32> -> vector<4x256xf32>
    %159 = arith.addf %153, %158 : vector<4x256xf32>
    %c0_130 = arith.constant 0 : index
    %c0_131 = arith.constant 0 : index
    %160 = vector.load %arg10[%c0_130, %c0_131] : memref<4x256xf32, #tpu.memory_space<vmem>>, vector<4x256xf32>
    %c255_i32_132 = arith.constant 255 : i32
    %161 = tpu.dynamic_rotate %160 by %c255_i32_132 dim 1 : vector<4x256xf32>, i32 -> vector<4x256xf32>
    %c5_133 = arith.constant 5 : index
    %c0_134 = arith.constant 0 : index
    %c0_135 = arith.constant 0 : index
    %162 = vector.load %arg1[%c5_133, %c0_134, %c0_135] : memref<9x1x256xf32, #tpu.memory_space<vmem>>, vector<1x1x256xf32>
    %163 = vector.shape_cast %162 : vector<1x1x256xf32> to vector<1x256xf32>
    %164 = vector.broadcast %163 : vector<1x256xf32> to vector<4x256xf32>
    %165 = arith.mulf %161, %164 : vector<4x256xf32>
    %c5_136 = arith.constant 5 : index
    %c0_137 = arith.constant 0 : index
    %c0_138 = arith.constant 0 : index
    %166 = vector.load %arg6[%c5_136, %c0_137, %c0_138] : memref<9x4x4xbf16, #tpu.memory_space<vmem>>, vector<1x4x4xbf16>
    %167 = vector.shape_cast %166 : vector<1x4x4xbf16> to vector<4x4xbf16>
    %168 = arith.truncf %165 : vector<4x256xf32> to vector<4x256xbf16>
    %cst_139 = arith.constant dense<0.000000e+00> : vector<4x256xf32>
    %169 = tpu.matmul %167, %168, %cst_139 {dimension_numbers = #tpu.dot_dimension_numbers<[1], [0], [0], [1], [0, 0, 1, 1], [], []>} : vector<4x4xbf16>, vector<4x256xbf16>, vector<4x256xf32> -> vector<4x256xf32>
    %170 = arith.addf %159, %169 : vector<4x256xf32>
    %c0_140 = arith.constant 0 : index
    %c0_141 = arith.constant 0 : index
    %171 = vector.load %arg10[%c0_140, %c0_141] : memref<4x256xf32, #tpu.memory_space<vmem>>, vector<4x256xf32>
    %c241_i32_142 = arith.constant 241 : i32
    %172 = tpu.dynamic_rotate %171 by %c241_i32_142 dim 1 : vector<4x256xf32>, i32 -> vector<4x256xf32>
    %c6_143 = arith.constant 6 : index
    %c0_144 = arith.constant 0 : index
    %c0_145 = arith.constant 0 : index
    %173 = vector.load %arg1[%c6_143, %c0_144, %c0_145] : memref<9x1x256xf32, #tpu.memory_space<vmem>>, vector<1x1x256xf32>
    %174 = vector.shape_cast %173 : vector<1x1x256xf32> to vector<1x256xf32>
    %175 = vector.broadcast %174 : vector<1x256xf32> to vector<4x256xf32>
    %176 = arith.mulf %172, %175 : vector<4x256xf32>
    %c6_146 = arith.constant 6 : index
    %c0_147 = arith.constant 0 : index
    %c0_148 = arith.constant 0 : index
    %177 = vector.load %arg6[%c6_146, %c0_147, %c0_148] : memref<9x4x4xbf16, #tpu.memory_space<vmem>>, vector<1x4x4xbf16>
    %178 = vector.shape_cast %177 : vector<1x4x4xbf16> to vector<4x4xbf16>
    %179 = arith.truncf %176 : vector<4x256xf32> to vector<4x256xbf16>
    %cst_149 = arith.constant dense<0.000000e+00> : vector<4x256xf32>
    %180 = tpu.matmul %178, %179, %cst_149 {dimension_numbers = #tpu.dot_dimension_numbers<[1], [0], [0], [1], [0, 0, 1, 1], [], []>} : vector<4x4xbf16>, vector<4x256xbf16>, vector<4x256xf32> -> vector<4x256xf32>
    %181 = arith.addf %170, %180 : vector<4x256xf32>
    %c0_150 = arith.constant 0 : index
    %c0_151 = arith.constant 0 : index
    %182 = vector.load %arg10[%c0_150, %c0_151] : memref<4x256xf32, #tpu.memory_space<vmem>>, vector<4x256xf32>
    %c240_i32_152 = arith.constant 240 : i32
    %183 = tpu.dynamic_rotate %182 by %c240_i32_152 dim 1 : vector<4x256xf32>, i32 -> vector<4x256xf32>
    %c7_153 = arith.constant 7 : index
    %c0_154 = arith.constant 0 : index
    %c0_155 = arith.constant 0 : index
    %184 = vector.load %arg1[%c7_153, %c0_154, %c0_155] : memref<9x1x256xf32, #tpu.memory_space<vmem>>, vector<1x1x256xf32>
    %185 = vector.shape_cast %184 : vector<1x1x256xf32> to vector<1x256xf32>
    %186 = vector.broadcast %185 : vector<1x256xf32> to vector<4x256xf32>
    %187 = arith.mulf %183, %186 : vector<4x256xf32>
    %c7_156 = arith.constant 7 : index
    %c0_157 = arith.constant 0 : index
    %c0_158 = arith.constant 0 : index
    %188 = vector.load %arg6[%c7_156, %c0_157, %c0_158] : memref<9x4x4xbf16, #tpu.memory_space<vmem>>, vector<1x4x4xbf16>
    %189 = vector.shape_cast %188 : vector<1x4x4xbf16> to vector<4x4xbf16>
    %190 = arith.truncf %187 : vector<4x256xf32> to vector<4x256xbf16>
    %cst_159 = arith.constant dense<0.000000e+00> : vector<4x256xf32>
    %191 = tpu.matmul %189, %190, %cst_159 {dimension_numbers = #tpu.dot_dimension_numbers<[1], [0], [0], [1], [0, 0, 1, 1], [], []>} : vector<4x4xbf16>, vector<4x256xbf16>, vector<4x256xf32> -> vector<4x256xf32>
    %192 = arith.addf %181, %191 : vector<4x256xf32>
    %c0_160 = arith.constant 0 : index
    %c0_161 = arith.constant 0 : index
    %193 = vector.load %arg10[%c0_160, %c0_161] : memref<4x256xf32, #tpu.memory_space<vmem>>, vector<4x256xf32>
    %c239_i32_162 = arith.constant 239 : i32
    %194 = tpu.dynamic_rotate %193 by %c239_i32_162 dim 1 : vector<4x256xf32>, i32 -> vector<4x256xf32>
    %c8_163 = arith.constant 8 : index
    %c0_164 = arith.constant 0 : index
    %c0_165 = arith.constant 0 : index
    %195 = vector.load %arg1[%c8_163, %c0_164, %c0_165] : memref<9x1x256xf32, #tpu.memory_space<vmem>>, vector<1x1x256xf32>
    %196 = vector.shape_cast %195 : vector<1x1x256xf32> to vector<1x256xf32>
    %197 = vector.broadcast %196 : vector<1x256xf32> to vector<4x256xf32>
    %198 = arith.mulf %194, %197 : vector<4x256xf32>
    %c8_166 = arith.constant 8 : index
    %c0_167 = arith.constant 0 : index
    %c0_168 = arith.constant 0 : index
    %199 = vector.load %arg6[%c8_166, %c0_167, %c0_168] : memref<9x4x4xbf16, #tpu.memory_space<vmem>>, vector<1x4x4xbf16>
    %200 = vector.shape_cast %199 : vector<1x4x4xbf16> to vector<4x4xbf16>
    %201 = arith.truncf %198 : vector<4x256xf32> to vector<4x256xbf16>
    %cst_169 = arith.constant dense<0.000000e+00> : vector<4x256xf32>
    %202 = tpu.matmul %200, %201, %cst_169 {dimension_numbers = #tpu.dot_dimension_numbers<[1], [0], [0], [1], [0, 0, 1, 1], [], []>} : vector<4x4xbf16>, vector<4x256xbf16>, vector<4x256xf32> -> vector<4x256xf32>
    %203 = arith.addf %192, %202 : vector<4x256xf32>
    %c0_170 = arith.constant 0 : index
    %c0_171 = arith.constant 0 : index
    %204 = vector.load %arg7[%c0_170, %c0_171] : memref<4x1xf32, #tpu.memory_space<vmem>>, vector<4x1xf32>
    %205 = vector.broadcast %204 : vector<4x1xf32> to vector<4x256xf32>
    %206 = arith.mulf %203, %205 : vector<4x256xf32>
    %c0_172 = arith.constant 0 : index
    %c0_173 = arith.constant 0 : index
    %207 = vector.load %arg8[%c0_172, %c0_173] : memref<4x1xf32, #tpu.memory_space<vmem>>, vector<4x1xf32>
    %208 = vector.broadcast %207 : vector<4x1xf32> to vector<4x256xf32>
    %209 = arith.addf %206, %208 : vector<4x256xf32>
    %c0_174 = arith.constant 0 : index
    %c0_175 = arith.constant 0 : index
    %c0_176 = arith.constant 0 : index
    %210 = vector.load %arg2[%c0_174, %c0_175, %c0_176] : memref<1x4x256xf32, #tpu.memory_space<vmem>>, vector<1x4x256xf32>
    %211 = vector.shape_cast %210 : vector<1x4x256xf32> to vector<4x256xf32>
    %212 = arith.addf %209, %211 : vector<4x256xf32>
    %cst_177 = arith.constant 0.000000e+00 : f32
    %213 = vector.broadcast %cst_177 : f32 to vector<4x256xf32>
    %214 = arith.maximumf %212, %213 : vector<4x256xf32>
    %c0_178 = arith.constant 0 : index
    %c0_179 = arith.constant 0 : index
    %c0_180 = arith.constant 0 : index
    %215 = vector.load %arg9[%c0_178, %c0_179, %c0_180] : memref<1x4x256xf32, #tpu.memory_space<vmem>>, vector<1x4x256xf32>
    %216 = vector.shape_cast %215 : vector<1x4x256xf32> to vector<4x256xf32>
    %217 = vector.shape_cast %214 : vector<4x256xf32> to vector<1x4x256xf32>
    tpu.vector_store %arg9[%c0_178, %c0_179, %c0_180], %217 {strides = array<i32>} : memref<1x4x256xf32, #tpu.memory_space<vmem>>, vector<1x4x256xf32>,
    return
  }
  func.func @transform_0(%arg0: i32) -> (i32, i32, i32) {
    %c0_i32 = arith.constant 0 : i32
    %c0_i32_0 = arith.constant 0 : i32
    %c0_i32_1 = arith.constant 0 : i32
    %c0_i32_2 = arith.constant 0 : i32
    return %c0_i32, %c0_i32_0, %c0_i32_1 : i32, i32, i32
  }
  func.func @transform_1(%arg0: i32) -> (i32, i32, i32) {
    %c0_i32 = arith.constant 0 : i32
    %c0_i32_0 = arith.constant 0 : i32
    %c0_i32_1 = arith.constant 0 : i32
    return %arg0, %c0_i32, %c0_i32_0 : i32, i32, i32
  }
  func.func @transform_2(%arg0: i32) -> (i32, i32, i32) {
    %c0_i32 = arith.constant 0 : i32
    %c0_i32_0 = arith.constant 0 : i32
    %c0_i32_1 = arith.constant 0 : i32
    %c0_i32_2 = arith.constant 0 : i32
    return %c0_i32, %c0_i32_0, %c0_i32_1 : i32, i32, i32
  }
  func.func @transform_3(%arg0: i32) -> (i32, i32) {
    %c0_i32 = arith.constant 0 : i32
    %c0_i32_0 = arith.constant 0 : i32
    %c0_i32_1 = arith.constant 0 : i32
    return %c0_i32, %c0_i32_0 : i32, i32
  }
  func.func @transform_4(%arg0: i32) -> (i32, i32) {
    %c0_i32 = arith.constant 0 : i32
    %c0_i32_0 = arith.constant 0 : i32
    %c0_i32_1 = arith.constant 0 : i32
    return %c0_i32, %c0_i32_0 : i32, i32
  }
  func.func @transform_5(%arg0: i32) -> (i32, i32, i32) {
    %c0_i32 = arith.constant 0 : i32
    %c0_i32_0 = arith.constant 0 : i32
    %c0_i32_1 = arith.constant 0 : i32
    %c0_i32_2 = arith.constant 0 : i32
    return %c0_i32, %c0_i32_0, %c0_i32_1 : i32, i32, i32
  }
  func.func @transform_6(%arg0: i32) -> (i32, i32) {
    %c0_i32 = arith.constant 0 : i32
    %c0_i32_0 = arith.constant 0 : i32
    %c0_i32_1 = arith.constant 0 : i32
    return %c0_i32, %c0_i32_0 : i32, i32
  }
  func.func @transform_7(%arg0: i32) -> (i32, i32) {
    %c0_i32 = arith.constant 0 : i32
    %c0_i32_0 = arith.constant 0 : i32
    %c0_i32_1 = arith.constant 0 : i32
    return %c0_i32, %c0_i32_0 : i32, i32
  }
  func.func @transform_8(%arg0: i32) -> (i32, i32, i32) {
    %c0_i32 = arith.constant 0 : i32
    %c0_i32_0 = arith.constant 0 : i32
    %c0_i32_1 = arith.constant 0 : i32
    return %arg0, %c0_i32, %c0_i32_0 : i32, i32, i32
  }
}

</mosaic_0001>

<llo_original>
// kernel: basic_block_forward.1
$region0: #{basic_block_forward.1}
  #allocation0 [shape = 'u32[]', space=smem, size = 0x4, offset = 0x4, fixed_abs, tag = 'smem constant byte address 0x4 - core index']
  #allocation1 [shape = 'u32[144,128]{1,0:T(1,128)}', space=vmem, size = 0x12000, scoped, tag = 'internal scratch']
  #allocation2 [shape = 'f32[4,256]{1,0:T(4,128)}', space=vmem, size = 0x1000, scoped, tag = 'scratch operand']
  %s0 = inlined_call_operand.vmem [shape: f32[9,1,256], index: 0, kind: input, shape index: {}]
  %s1 = inlined_call_operand.vmem [shape: f32[2,4,256], index: 1, kind: input, shape index: {}]
  %s2 = inlined_call_operand.vmem [shape: bf16[9,4,4], index: 2, kind: input, shape index: {}]
  %s3 = inlined_call_operand.vmem [shape: f32[4,1], index: 3, kind: input, shape index: {}]
  %s4 = inlined_call_operand.vmem [shape: f32[4,1], index: 4, kind: input, shape index: {}]
  %s5 = inlined_call_operand.vmem [shape: bf16[9,4,4], index: 5, kind: input, shape index: {}]
  %s6 = inlined_call_operand.vmem [shape: f32[4,1], index: 6, kind: input, shape index: {}]
  %s7 = inlined_call_operand.vmem [shape: f32[4,1], index: 7, kind: input, shape index: {}]
  %s8 = inlined_call_operand.vmem [shape: f32[2,4,256], index: 8, kind: output, shape index: {}]
  %s9 = sld [smem:[#allocation0]]
  $region65: #{basic_block_forward.1} parent=0
    _
  %s11 = ssub.s32 1, %s9
  %s12 = scalar_select 0, %s11, %s9
  loop: start=0, step=1, limit=4
  $region2: #{basic_block_forward.1} parent=0 // loop_pre_header
    _
  $region3: #{basic_block_forward.1} parent=0 // loop_header
    %s14 = sphi 0, %s18
    %p15 = scmp.ge.s32.totalorder %s14, 4
    %s22 = sphi 0, %s22
    %s24 = sphi 0, %s22
    %s25 = sphi 0, %s24
    %s39 = sphi 0, %s25
    %s45 = sphi 0, %s47
    %s48 = sphi 0, %s45
    %s49 = sphi 0, %s48
    %s65 = sphi 0, %s49
    %s69 = sphi 0, %s69
    %s71 = sphi 0, %s69
    %s72 = sphi 0, %s71
    %s86 = sphi 0, %s72
    %s90 = sphi 0, %s90
    %s92 = sphi 0, %s90
    %s93 = sphi 0, %s92
    %s107 = sphi 0, %s93
    %s111 = sphi 0, %s111
    %s113 = sphi 0, %s111
    %s114 = sphi 0, %s113
    %s128 = sphi 0, %s114
    %s132 = sphi 0, %s132
    %s134 = sphi 0, %s132
    %s135 = sphi 0, %s134
    %s149 = sphi 0, %s135
    %s153 = sphi 0, %s153
    %s155 = sphi 0, %s153
    %s156 = sphi 0, %s155
    %s170 = sphi 0, %s156
    %s174 = sphi 0, %s174
    %s176 = sphi 0, %s174
    %s177 = sphi 0, %s176
    %s191 = sphi 0, %s177
    %s197 = sphi 0, %s199
    %s200 = sphi 0, %s197
    %s201 = sphi 0, %s200
    %s217 = sphi 0, %s201
  $region4: #{basic_block_forward.1} parent=0 // loop_header_branch
    %17 = sbr.rel (%p15) target = $region8
  $region5: #{basic_block_forward.1} parent=0 // loop_body
    %s19 = ssub.s32 %s14, 1
    %s20 = ssub.s32 %s14, 2
    %s21 = sadd.s32 %s14, 1
    %s23 = sadd.s32 %s22, 1
    %p26 = scmp.eq.s32.totalorder %s14, 1
    %p27 = scmp.ne.s32.totalorder %s22, %s24
    %p28 = scmp.eq.s32.totalorder %s14, 0
    %p29 = por %p27, %p28
    %p30 = scmp.ne.s32.totalorder %s22, %s24
    %p31 = scmp.eq.s32.totalorder %s19, 1
    %p32 = por %p30, %p31
    %p33 = scmp.ne.s32.totalorder %s24, %s25
    %p34 = scmp.eq.s32.totalorder %s19, 0
    %p35 = por %p33, %p34
    %p36 = scmp.ne.s32.totalorder %s24, %s25
    %p37 = scmp.eq.s32.totalorder %s20, 1
    %p38 = por %p36, %p37
    %p40 = scmp.ne.s32.totalorder %s25, %s39
    %p41 = scmp.eq.s32.totalorder %s20, 0
    %p42 = por %p40, %p41
    %s43 = ssub.s32 %s14, %s21
    %p44 = scmp.eq.s32.totalorder %s43, 0
    %s46 = sadd.s32 %s45, 1
    %s47 = scalar_select %p44, %s45, %s46
    %p50 = pneg %p44
    %p51 = scmp.eq.s32.totalorder %s14, 1
    %p52 = por %p50, %p51
    %p53 = scmp.ne.s32.totalorder %s45, %s48
    %p54 = scmp.eq.s32.totalorder %s14, 0
    %p55 = por %p53, %p54
    %p56 = scmp.ne.s32.totalorder %s45, %s48
    %p57 = scmp.eq.s32.totalorder %s19, 1
    %p58 = por %p56, %p57
    %p59 = scmp.ne.s32.totalorder %s48, %s49
    %p60 = scmp.eq.s32.totalorder %s19, 0
    %p61 = por %p59, %p60
    %p62 = scmp.ne.s32.totalorder %s48, %s49
    %p63 = scmp.eq.s32.totalorder %s20, 1
    %p64 = por %p62, %p63
    %p66 = scmp.ne.s32.totalorder %s49, %s65
    %p67 = scmp.eq.s32.totalorder %s20, 0
    %p68 = por %p66, %p67
    %s70 = sadd.s32 %s69, 1
    %p73 = scmp.eq.s32.totalorder %s14, 1
    %p74 = scmp.ne.s32.totalorder %s69, %s71
    %p75 = scmp.eq.s32.totalorder %s14, 0
    %p76 = por %p74, %p75
    %p77 = scmp.ne.s32.totalorder %s69, %s71
    %p78 = scmp.eq.s32.totalorder %s19, 1
    %p79 = por %p77, %p78
    %p80 = scmp.ne.s32.totalorder %s71, %s72
    %p81 = scmp.eq.s32.totalorder %s19, 0
    %p82 = por %p80, %p81
    %p83 = scmp.ne.s32.totalorder %s71, %s72
    %p84 = scmp.eq.s32.totalorder %s20, 1
    %p85 = por %p83, %p84
    %p87 = scmp.ne.s32.totalorder %s72, %s86
    %p88 = scmp.eq.s32.totalorder %s20, 0
    %p89 = por %p87, %p88
    %s91 = sadd.s32 %s90, 1
    %p94 = scmp.eq.s32.totalorder %s14, 1
    %p95 = scmp.ne.s32.totalorder %s90, %s92
    %p96 = scmp.eq.s32.totalorder %s14, 0
    %p97 = por %p95, %p96
    %p98 = scmp.ne.s32.totalorder %s90, %s92
    %p99 = scmp.eq.s32.totalorder %s19, 1
    %p100 = por %p98, %p99
    %p101 = scmp.ne.s32.totalorder %s92, %s93
    %p102 = scmp.eq.s32.totalorder %s19, 0
    %p103 = por %p101, %p102
    %p104 = scmp.ne.s32.totalorder %s92, %s93
    %p105 = scmp.eq.s32.totalorder %s20, 1
    %p106 = por %p104, %p105
    %p108 = scmp.ne.s32.totalorder %s93, %s107
    %p109 = scmp.eq.s32.totalorder %s20, 0
    %p110 = por %p108, %p109
    %s112 = sadd.s32 %s111, 1
    %p115 = scmp.eq.s32.totalorder %s14, 1
    %p116 = scmp.ne.s32.totalorder %s111, %s113
    %p117 = scmp.eq.s32.totalorder %s14, 0
    %p118 = por %p116, %p117
    %p119 = scmp.ne.s32.totalorder %s111, %s113
    %p120 = scmp.eq.s32.totalorder %s19, 1
    %p121 = por %p119, %p120
    %p122 = scmp.ne.s32.totalorder %s113, %s114
    %p123 = scmp.eq.s32.totalorder %s19, 0
    %p124 = por %p122, %p123
    %p125 = scmp.ne.s32.totalorder %s113, %s114
    %p126 = scmp.eq.s32.totalorder %s20, 1
    %p127 = por %p125, %p126
    %p129 = scmp.ne.s32.totalorder %s114, %s128
    %p130 = scmp.eq.s32.totalorder %s20, 0
    %p131 = por %p129, %p130
    %s133 = sadd.s32 %s132, 1
    %p136 = scmp.eq.s32.totalorder %s14, 1
    %p137 = scmp.ne.s32.totalorder %s132, %s134
    %p138 = scmp.eq.s32.totalorder %s14, 0
    %p139 = por %p137, %p138
    %p140 = scmp.ne.s32.totalorder %s132, %s134
    %p141 = scmp.eq.s32.totalorder %s19, 1
    %p142 = por %p140, %p141
    %p143 = scmp.ne.s32.totalorder %s134, %s135
    %p144 = scmp.eq.s32.totalorder %s19, 0
    %p145 = por %p143, %p144
    %p146 = scmp.ne.s32.totalorder %s134, %s135
    %p147 = scmp.eq.s32.totalorder %s20, 1
    %p148 = por %p146, %p147
    %p150 = scmp.ne.s32.totalorder %s135, %s149
    %p151 = scmp.eq.s32.totalorder %s20, 0
    %p152 = por %p150, %p151
    %s154 = sadd.s32 %s153, 1
    %p157 = scmp.eq.s32.totalorder %s14, 1
    %p158 = scmp.ne.s32.totalorder %s153, %s155
    %p159 = scmp.eq.s32.totalorder %s14, 0
    %p160 = por %p158, %p159
    %p161 = scmp.ne.s32.totalorder %s153, %s155
    %p162 = scmp.eq.s32.totalorder %s19, 1
    %p163 = por %p161, %p162
    %p164 = scmp.ne.s32.totalorder %s155, %s156
    %p165 = scmp.eq.s32.totalorder %s19, 0
    %p166 = por %p164, %p165
    %p167 = scmp.ne.s32.totalorder %s155, %s156
    %p168 = scmp.eq.s32.totalorder %s20, 1
    %p169 = por %p167, %p168
    %p171 = scmp.ne.s32.totalorder %s156, %s170
    %p172 = scmp.eq.s32.totalorder %s20, 0
    %p173 = por %p171, %p172
    %s175 = sadd.s32 %s174, 1
    %p178 = scmp.eq.s32.totalorder %s14, 1
    %p179 = scmp.ne.s32.totalorder %s174, %s176
    %p180 = scmp.eq.s32.totalorder %s14, 0
    %p181 = por %p179, %p180
    %p182 = scmp.ne.s32.totalorder %s174, %s176
    %p183 = scmp.eq.s32.totalorder %s19, 1
    %p184 = por %p182, %p183
    %p185 = scmp.ne.s32.totalorder %s176, %s177
    %p186 = scmp.eq.s32.totalorder %s19, 0
    %p187 = por %p185, %p186
    %p188 = scmp.ne.s32.totalorder %s176, %s177
    %p189 = scmp.eq.s32.totalorder %s20, 1
    %p190 = por %p188, %p189
    %p192 = scmp.ne.s32.totalorder %s177, %s191
    %p193 = scmp.eq.s32.totalorder %s20, 0
    %p194 = por %p192, %p193
    %s195 = ssub.s32 %s14, %s21
    %p196 = scmp.eq.s32.totalorder %s195, 0
    %s198 = sadd.s32 %s197, 1
    %s199 = scalar_select %p196, %s197, %s198
    %p202 = pneg %p196
    %p203 = scmp.eq.s32.totalorder %s14, 1
    %p204 = por %p202, %p203
    %p205 = scmp.ne.s32.totalorder %s197, %s200
    %p206 = scmp.eq.s32.totalorder %s14, 0
    %p207 = por %p205, %p206
    %p208 = scmp.ne.s32.totalorder %s197, %s200
    %p209 = scmp.eq.s32.totalorder %s19, 1
    %p210 = por %p208, %p209
    %p211 = scmp.ne.s32.totalorder %s200, %s201
    %p212 = scmp.eq.s32.totalorder %s19, 0
    %p213 = por %p211, %p212
    %p214 = scmp.ne.s32.totalorder %s200, %s201
    %p215 = scmp.eq.s32.totalorder %s20, 1
    %p216 = por %p214, %p215
    %p218 = scmp.ne.s32.totalorder %s201, %s217
    %p219 = scmp.eq.s32.totalorder %s20, 0
    %p220 = por %p218, %p219
    %p221 = scmp.le.s32.totalorder 1, %s14
    %p222 = scmp.lt.s32.totalorder %s14, 3
    %p223 = pnand %p221, %p222
    %p224 = pneg %p223
    // Predicated region
    $region9: #{basic_block_forward.1} parent=5 // pred_check
      _
    $region10: #{basic_block_forward.1} parent=5 // pred_check_branch
      %226 = sbr.rel (%p223) target = $region12
    $region11: #{basic_block_forward.1} parent=5 // pred_region
      %s227 = ssub.s32 %s14, 1
      // Predicated region
      $region13: #{basic_block_forward.1} parent=11 // pred_check
        %p228 = pneg %p35
      $region14: #{basic_block_forward.1} parent=11 // pred_check_branch
        %230 = sbr.rel (%p228) target = $region16
      $region15: #{basic_block_forward.1} parent=11 // pred_region
        _
      $region16: #{basic_block_forward.1} parent=11 // pred_fallthru
        _
      // Predicated region
      $region17: #{basic_block_forward.1} parent=11 // pred_check
        %p231 = pneg %p82
      $region18: #{basic_block_forward.1} parent=11 // pred_check_branch
        %233 = sbr.rel (%p231) target = $region20
      $region19: #{basic_block_forward.1} parent=11 // pred_region
        _
      $region20: #{basic_block_forward.1} parent=11 // pred_fallthru
        _
      // Predicated region
      $region21: #{basic_block_forward.1} parent=11 // pred_check
        %p234 = pneg %p103
      $region22: #{basic_block_forward.1} parent=11 // pred_check_branch
        %236 = sbr.rel (%p234) target = $region24
      $region23: #{basic_block_forward.1} parent=11 // pred_region
        _
      $region24: #{basic_block_forward.1} parent=11 // pred_fallthru
        _
      // Predicated region
      $region25: #{basic_block_forward.1} parent=11 // pred_check
        %p237 = pneg %p124
      $region26: #{basic_block_forward.1} parent=11 // pred_check_branch
        %239 = sbr.rel (%p237) target = $region28
      $region27: #{basic_block_forward.1} parent=11 // pred_region
        _
      $region28: #{basic_block_forward.1} parent=11 // pred_fallthru
        _
      // Predicated region
      $region29: #{basic_block_forward.1} parent=11 // pred_check
        %p240 = pneg %p145
      $region30: #{basic_block_forward.1} parent=11 // pred_check_branch
        %242 = sbr.rel (%p240) target = $region32
      $region31: #{basic_block_forward.1} parent=11 // pred_region
        _
      $region32: #{basic_block_forward.1} parent=11 // pred_fallthru
        _
      // Predicated region
      $region33: #{basic_block_forward.1} parent=11 // pred_check
        %p243 = pneg %p166
      $region34: #{basic_block_forward.1} parent=11 // pred_check_branch
        %245 = sbr.rel (%p243) target = $region36
      $region35: #{basic_block_forward.1} parent=11 // pred_region
        _
      $region36: #{basic_block_forward.1} parent=11 // pred_fallthru
        _
      // Predicated region
      $region37: #{basic_block_forward.1} parent=11 // pred_check
        %p246 = pneg %p187
      $region38: #{basic_block_forward.1} parent=11 // pred_check_branch
        %248 = sbr.rel (%p246) target = $region40
      $region39: #{basic_block_forward.1} parent=11 // pred_region
        _
      $region40: #{basic_block_forward.1} parent=11 // pred_fallthru
        _
    $region12: #{basic_block_forward.1} parent=5 // pred_fallthru
      _
    %p249 = scmp.lt.s32.totalorder %s14, 2
    // Predicated region
    $region41: #{basic_block_forward.1} parent=5 // pred_check
      %p250 = pneg %p249
    $region42: #{basic_block_forward.1} parent=5 // pred_check_branch
      %252 = sbr.rel (%p250) target = $region44
    $region43: #{basic_block_forward.1} parent=5 // pred_region
      // Predicated region
      $region45: #{basic_block_forward.1} parent=43 // pred_check
        %p253 = pneg %p55
      $region46: #{basic_block_forward.1} parent=43 // pred_check_branch
        %255 = sbr.rel (%p253) target = $region48
      $region47: #{basic_block_forward.1} parent=43 // pred_region
        %p256 = scmp.lt.s32.totalorder %s14, 1
        %s257 = scalar_select %p256, %s14, 1
        %s258 = smul.addr %s257, 2
        %s259 = smul.addr %s258, 4
        %s260 = scalar_lea.vmem %s1, %s259
      $region48: #{basic_block_forward.1} parent=43 // pred_fallthru
        _
    $region44: #{basic_block_forward.1} parent=5 // pred_fallthru
      _
    %p261 = scmp.le.s32.totalorder 1, %s14
    %p262 = scmp.lt.s32.totalorder %s14, 3
    %p263 = pnand %p261, %p262
    %p264 = pneg %p263
    // Predicated region
    $region49: #{basic_block_forward.1} parent=5 // pred_check
      _
    $region50: #{basic_block_forward.1} parent=5 // pred_check_branch
      %266 = sbr.rel (%p263) target = $region52
    $region51: #{basic_block_forward.1} parent=5 // pred_region
      %s267 = ssub.s32 %s14, 1
      %p268 = pneg %p35
      %p269 = pneg %p32
      %p270 = scmp.lt.s32.totalorder %s19, 1
      %s271 = scalar_select %p270, %s19, 1
      %s272 = smul.addr %s271, 2
      %s273 = smul.addr %s272, 4
      %s274 = scalar_lea.vmem %s1, %s273
      %p275 = pneg %p61
      %p276 = pneg %p58
      %p277 = pneg %p82
      %p278 = pneg %p79
      %p279 = pneg %p103
      %p280 = pneg %p100
      %p281 = pneg %p124
      %p282 = pneg %p121
      %p283 = pneg %p145
      %p284 = pneg %p142
      %p285 = pneg %p166
      %p286 = pneg %p163
      %p287 = pneg %p187
      %p288 = pneg %p184
      %p289 = pneg %p213
      %p290 = pneg %p210
      %p291 = scmp.lt.s32.totalorder %s19, 1
      %s292 = scalar_select %p291, %s19, 1
      %s293 = smul.addr %s292, 2
      %s294 = smul.addr %s293, 4
      %s295 = scalar_lea.vmem %s8, %s294
      %p296 = scmp.lt.s32.totalorder %s19, 1
      %s297 = scalar_select %p296, %s19, 1
      %s298 = smul.addr %s297, 2
      %s299 = smul.addr %s298, 4
      %s300 = scalar_lea.vmem %s1, %s299
      %p301 = scmp.lt.s32.totalorder %s19, 1
      %s302 = scalar_select %p301, %s19, 1
      %s303 = smul.addr %s302, 2
      %s304 = smul.addr %s303, 4
      %s305 = scalar_lea.vmem %s8, %s304
      %v307 = vld [vmem:[%s300] sm:$0xff]
      %v309 = vcombine.high %v307, %v307
      %311 = vrot.lane.b32.xlu0 %v307, 17
      %v312 = vpop.permute.xlu0 %311
      %313 = vrot.lane.b32.xlu0 %v309, 17
      %v314 = vpop.permute.xlu0 %313
      %v315 = vlaneseq
      %v316 = vand.u32 %v315, 127
      %vm317 = vcmp.lt.s32.totalorder %v316, 17
      %v318 = vsel %vm317, %v312, %v314
      %v319 = vsel %vm317, %v314, %v312
      %v320 = vld [vmem:[%s0] sm:$0x3]
      %v322 = vlaneseq
      %v323 = vshrl.u32 %v322, 7
      %v324 = vsub.s32 0, %v323
      %v325 = vrot.slane %v320, %v324
      %v326 = vlaneseq
      %v327 = vshrl.u32 %v326, 7
      %v328 = vsub.s32 1, %v327
      %v329 = vrot.slane %v320, %v328
      %v332 = vmul.f32 %v319, %v325
      %v333 = vmul.f32 %v318, %v329
      %v334 = vld [vmem:[%s2] sm:$0x3]
      %v335 = vpack.c.bf16 %v332, %v332
      %v336 = vpack.c.bf16 %v333, %v333
      %337 = vrot.lane.b32.xlu0 %v307, 16
      %v338 = vpop.permute.xlu0 %337
      %339 = vrot.lane.b32.xlu0 %v309, 16
      %v340 = vpop.permute.xlu0 %339
      %vm341 = vcmp.lt.s32.totalorder %v316, 16
      %v342 = vsel %vm341, %v338, %v340
      %v343 = vsel %vm341, %v340, %v338
      %s344 = scalar_lea.vmem %s0, 2
      %v345 = vld [vmem:[%s344] sm:$0x3]
      %v347 = vlaneseq
      %v348 = vshrl.u32 %v347, 7
      %v349 = vsub.s32 0, %v348
      %v350 = vrot.slane %v345, %v349
      %v351 = vlaneseq
      %v352 = vshrl.u32 %v351, 7
      %v353 = vsub.s32 1, %v352
      %v354 = vrot.slane %v345, %v353
      %v357 = vmul.f32 %v343, %v350
      %v358 = vmul.f32 %v342, %v354
      %s359 = scalar_lea.vmem %s2, 2
      %v360 = vld [vmem:[%s359] sm:$0x3]
      %v361 = vpack.c.bf16 %v357, %v357
      %v362 = vpack.c.bf16 %v358, %v358
      %vm363 = vcmask 31744
      %v365 = vsel %vm363, %v360, 0
      %vm367 = vcmask 1041408
      %v369 = vsel %vm367, %v361, 0
      %v372 = vsel %vm367, %v362, 0
      %374 = vmatprep.subr.bf16.mxu0 %v372
      %375 = vmatpush1.bf16.msra.mxu0 %v369
      %376 = vmatprep.subr.bf16.mxu0 0
      %377 = vmatpush1.bf16.msra.mxu0 0
      %378 = vmatprep.subr.bf16.mxu0 0
      %379 = vmatpush1.bf16.msra.mxu0 0
      %380 = vmatprep.subr.bf16.mxu0 0
      %381 = vmatpush1.bf16.msra.mxu0 0
      %382 = vmatprep.subr.bf16.mxu0 0
      %383 = vmatpush1.bf16.msra.mxu0 0
      %384 = vmatprep.subr.bf16.mxu0 0
      %385 = vmatpush1.bf16.msra.mxu0 0
      %386 = vmatprep.subr.bf16.mxu0 0
      %387 = vmatpush1.bf16.msra.mxu0 0
      %388 = vmatprep.subr.bf16.mxu0 0
      %389 = vmatpush1.bf16.msra.mxu0 0
      %390 = vmatprep.subr.bf16.mxu0 0
      %391 = vmatpush1.bf16.msra.mxu0 0
      %392 = vmatprep.subr.bf16.mxu0 0
      %393 = vmatpush1.bf16.msra.mxu0 0
      %394 = vmatprep.subr.bf16.mxu0 0
      %395 = vmatpush1.bf16.msra.mxu0 0
      %396 = vmatprep.subr.bf16.mxu0 0
      %397 = vmatpush1.bf16.msra.mxu0 0
      %398 = vmatprep.subr.bf16.mxu0 0
      %399 = vmatpush1.bf16.msra.mxu0 0
      %400 = vmatprep.subr.bf16.mxu0 0
      %401 = vmatpush1.bf16.msra.mxu0 0
      %402 = vmatprep.subr.bf16.mxu0 0
      %403 = vmatpush1.bf16.msra.mxu0 0
      %404 = vmatprep.subr.bf16.mxu0 0
      %405 = vmatpush1.bf16.msra.mxu0 0
      %406 = vmatprep.mubr.bf16.mxu0 0
      %407 = vmatmul.mubr.bf16.gmra.mrb[0].mxu0 %v365
      %v408 = vpop.f32.mrb[0].mxu0
      %v409 = vadd.f32 0.0, %v408
      %v410 = vpop.f32.mrb[0].mxu0
      %v411 = vadd.f32 0.0, %v410
      %v412 = vpop.f32.mrb[0].mxu0
      %v413 = vpop.f32.mrb[0].mxu0
      %414 = vdwg.mxu0
      %v416 = vsel %vm363, %v334, 0
      %v419 = vsel %vm367, %v335, 0
      %v422 = vsel %vm367, %v336, 0
      %424 = vmatprep.subr.bf16.mxu0 %v422
      %425 = vmatpush1.bf16.msra.mxu0 %v419
      %426 = vmatprep.subr.bf16.mxu0 0
      %427 = vmatpush1.bf16.msra.mxu0 0
      %428 = vmatprep.subr.bf16.mxu0 0
      %429 = vmatpush1.bf16.msra.mxu0 0
      %430 = vmatprep.subr.bf16.mxu0 0
      %431 = vmatpush1.bf16.msra.mxu0 0
      %432 = vmatprep.subr.bf16.mxu0 0
      %433 = vmatpush1.bf16.msra.mxu0 0
      %434 = vmatprep.subr.bf16.mxu0 0
      %435 = vmatpush1.bf16.msra.mxu0 0
      %436 = vmatprep.subr.bf16.mxu0 0
      %437 = vmatpush1.bf16.msra.mxu0 0
      %438 = vmatprep.subr.bf16.mxu0 0
      %439 = vmatpush1.bf16.msra.mxu0 0
      %440 = vmatprep.subr.bf16.mxu0 0
      %441 = vmatpush1.bf16.msra.mxu0 0
      %442 = vmatprep.subr.bf16.mxu0 0
      %443 = vmatpush1.bf16.msra.mxu0 0
      %444 = vmatprep.subr.bf16.mxu0 0
      %445 = vmatpush1.bf16.msra.mxu0 0
      %446 = vmatprep.subr.bf16.mxu0 0
      %447 = vmatpush1.bf16.msra.mxu0 0
      %448 = vmatprep.subr.bf16.mxu0 0
      %449 = vmatpush1.bf16.msra.mxu0 0
      %450 = vmatprep.subr.bf16.mxu0 0
      %451 = vmatpush1.bf16.msra.mxu0 0
      %452 = vmatprep.subr.bf16.mxu0 0
      %453 = vmatpush1.bf16.msra.mxu0 0
      %454 = vmatprep.subr.bf16.mxu0 0
      %455 = vmatpush1.bf16.msra.mxu0 0
      %456 = vmatprep.mubr.bf16.mxu0 0
      %457 = vmatmul.mubr.bf16.gmra.mrb[0].mxu0 %v416
      %v458 = vpop.f32.mrb[0].mxu0
      %v459 = vadd.f32 %v409, %v458
      %v460 = vpop.f32.mrb[0].mxu0
      %v461 = vadd.f32 %v411, %v460
      %v462 = vpop.f32.mrb[0].mxu0
      %v463 = vpop.f32.mrb[0].mxu0
      %464 = vdwg.mxu0
      %465 = vrot.lane.b32.xlu0 %v307, 15
      %v466 = vpop.permute.xlu0 %465
      %467 = vrot.lane.b32.xlu0 %v309, 15
      %v468 = vpop.permute.xlu0 %467
      %vm469 = vcmp.lt.s32.totalorder %v316, 15
      %v470 = vsel %vm469, %v466, %v468
      %v471 = vsel %vm469, %v468, %v466
      %s472 = scalar_lea.vmem %s0, 4
      %v473 = vld [vmem:[%s472] sm:$0x3]
      %v475 = vlaneseq
      %v476 = vshrl.u32 %v475, 7
      %v477 = vsub.s32 0, %v476
      %v478 = vrot.slane %v473, %v477
      %v479 = vlaneseq
      %v480 = vshrl.u32 %v479, 7
      %v481 = vsub.s32 1, %v480
      %v482 = vrot.slane %v473, %v481
      %v485 = vmul.f32 %v471, %v478
      %v486 = vmul.f32 %v470, %v482
      %s487 = scalar_lea.vmem %s2, 4
      %v488 = vld [vmem:[%s487] sm:$0x3]
      %v489 = vpack.c.bf16 %v485, %v485
      %v490 = vpack.c.bf16 %v486, %v486
      %v492 = vsel %vm363, %v488, 0
      %v495 = vsel %vm367, %v489, 0
      %v498 = vsel %vm367, %v490, 0
      %500 = vmatprep.subr.bf16.mxu0 %v498
      %501 = vmatpush1.bf16.msra.mxu0 %v495
      %502 = vmatprep.subr.bf16.mxu0 0
      %503 = vmatpush1.bf16.msra.mxu0 0
      %504 = vmatprep.subr.bf16.mxu0 0
      %505 = vmatpush1.bf16.msra.mxu0 0
      %506 = vmatprep.subr.bf16.mxu0 0
      %507 = vmatpush1.bf16.msra.mxu0 0
      %508 = vmatprep.subr.bf16.mxu0 0
      %509 = vmatpush1.bf16.msra.mxu0 0
      %510 = vmatprep.subr.bf16.mxu0 0
      %511 = vmatpush1.bf16.msra.mxu0 0
      %512 = vmatprep.subr.bf16.mxu0 0
      %513 = vmatpush1.bf16.msra.mxu0 0
      %514 = vmatprep.subr.bf16.mxu0 0
      %515 = vmatpush1.bf16.msra.mxu0 0
      %516 = vmatprep.subr.bf16.mxu0 0
      %517 = vmatpush1.bf16.msra.mxu0 0
      %518 = vmatprep.subr.bf16.mxu0 0
      %519 = vmatpush1.bf16.msra.mxu0 0
      %520 = vmatprep.subr.bf16.mxu0 0
      %521 = vmatpush1.bf16.msra.mxu0 0
      %522 = vmatprep.subr.bf16.mxu0 0
      %523 = vmatpush1.bf16.msra.mxu0 0
      %524 = vmatprep.subr.bf16.mxu0 0
      %525 = vmatpush1.bf16.msra.mxu0 0
      %526 = vmatprep.subr.bf16.mxu0 0
      %527 = vmatpush1.bf16.msra.mxu0 0
      %528 = vmatprep.subr.bf16.mxu0 0
      %529 = vmatpush1.bf16.msra.mxu0 0
      %530 = vmatprep.subr.bf16.mxu0 0
      %531 = vmatpush1.bf16.msra.mxu0 0
      %532 = vmatprep.mubr.bf16.mxu0 0
      %533 = vmatmul.mubr.bf16.gmra.mrb[0].mxu0 %v492
      %v534 = vpop.f32.mrb[0].mxu0
      %v535 = vadd.f32 0.0, %v534
      %v536 = vpop.f32.mrb[0].mxu0
      %v537 = vadd.f32 0.0, %v536
      %v538 = vpop.f32.mrb[0].mxu0
      %v539 = vpop.f32.mrb[0].mxu0
      %540 = vdwg.mxu0
      %v541 = vadd.f32 %v459, %v535
      %v542 = vadd.f32 %v461, %v537
      %543 = vrot.lane.b32.xlu0 %v307, 1
      %v544 = vpop.permute.xlu0 %543
      %545 = vrot.lane.b32.xlu0 %v309, 1
      %v546 = vpop.permute.xlu0 %545
      %vm547 = vcmp.lt.s32.totalorder %v316, 1
      %v548 = vsel %vm547, %v544, %v546
      %v549 = vsel %vm547, %v546, %v544
      %s550 = scalar_lea.vmem %s0, 6
      %v551 = vld [vmem:[%s550] sm:$0x3]
      %v553 = vlaneseq
      %v554 = vshrl.u32 %v553, 7
      %v555 = vsub.s32 0, %v554
      %v556 = vrot.slane %v551, %v555
      %v557 = vlaneseq
      %v558 = vshrl.u32 %v557, 7
      %v559 = vsub.s32 1, %v558
      %v560 = vrot.slane %v551, %v559
      %v563 = vmul.f32 %v549, %v556
      %v564 = vmul.f32 %v548, %v560
      %s565 = scalar_lea.vmem %s2, 6
      %v566 = vld [vmem:[%s565] sm:$0x3]
      %v567 = vpack.c.bf16 %v563, %v563
      %v568 = vpack.c.bf16 %v564, %v564
      %v570 = vsel %vm363, %v566, 0
      %v573 = vsel %vm367, %v567, 0
      %v576 = vsel %vm367, %v568, 0
      %578 = vmatprep.subr.bf16.mxu0 %v576
      %579 = vmatpush1.bf16.msra.mxu0 %v573
      %580 = vmatprep.subr.bf16.mxu0 0
      %581 = vmatpush1.bf16.msra.mxu0 0
      %582 = vmatprep.subr.bf16.mxu0 0
      %583 = vmatpush1.bf16.msra.mxu0 0
      %584 = vmatprep.subr.bf16.mxu0 0
      %585 = vmatpush1.bf16.msra.mxu0 0
      %586 = vmatprep.subr.bf16.mxu0 0
      %587 = vmatpush1.bf16.msra.mxu0 0
      %588 = vmatprep.subr.bf16.mxu0 0
      %589 = vmatpush1.bf16.msra.mxu0 0
      %590 = vmatprep.subr.bf16.mxu0 0
      %591 = vmatpush1.bf16.msra.mxu0 0
      %592 = vmatprep.subr.bf16.mxu0 0
      %593 = vmatpush1.bf16.msra.mxu0 0
      %594 = vmatprep.subr.bf16.mxu0 0
      %595 = vmatpush1.bf16.msra.mxu0 0
      %596 = vmatprep.subr.bf16.mxu0 0
      %597 = vmatpush1.bf16.msra.mxu0 0
      %598 = vmatprep.subr.bf16.mxu0 0
      %599 = vmatpush1.bf16.msra.mxu0 0
      %600 = vmatprep.subr.bf16.mxu0 0
      %601 = vmatpush1.bf16.msra.mxu0 0
      %602 = vmatprep.subr.bf16.mxu0 0
      %603 = vmatpush1.bf16.msra.mxu0 0
      %604 = vmatprep.subr.bf16.mxu0 0
      %605 = vmatpush1.bf16.msra.mxu0 0
      %606 = vmatprep.subr.bf16.mxu0 0
      %607 = vmatpush1.bf16.msra.mxu0 0
      %608 = vmatprep.subr.bf16.mxu0 0
      %609 = vmatpush1.bf16.msra.mxu0 0
      %610 = vmatprep.mubr.bf16.mxu0 0
      %611 = vmatmul.mubr.bf16.gmra.mrb[0].mxu0 %v570
      %v612 = vpop.f32.mrb[0].mxu0
      %v613 = vadd.f32 0.0, %v612
      %v614 = vpop.f32.mrb[0].mxu0
      %v615 = vadd.f32 0.0, %v614
      %v616 = vpop.f32.mrb[0].mxu0
      %v617 = vpop.f32.mrb[0].mxu0
      %618 = vdwg.mxu0
      %v619 = vadd.f32 %v541, %v613
      %v620 = vadd.f32 %v542, %v615
      %s621 = scalar_lea.vmem %s2, 8
      %v622 = vld [vmem:[%s621] sm:$0x3]
      %v623 = vpack.c.bf16 %v307, %v307
      %v624 = vpack.c.bf16 %v309, %v309
      %v626 = vsel %vm363, %v622, 0
      %v629 = vsel %vm367, %v623, 0
      %v632 = vsel %vm367, %v624, 0
      %634 = vmatprep.subr.bf16.mxu0 %v632
      %635 = vmatpush1.bf16.msra.mxu0 %v629
      %636 = vmatprep.subr.bf16.mxu0 0
      %637 = vmatpush1.bf16.msra.mxu0 0
      %638 = vmatprep.subr.bf16.mxu0 0
      %639 = vmatpush1.bf16.msra.mxu0 0
      %640 = vmatprep.subr.bf16.mxu0 0
      %641 = vmatpush1.bf16.msra.mxu0 0
      %642 = vmatprep.subr.bf16.mxu0 0
      %643 = vmatpush1.bf16.msra.mxu0 0
      %644 = vmatprep.subr.bf16.mxu0 0
      %645 = vmatpush1.bf16.msra.mxu0 0
      %646 = vmatprep.subr.bf16.mxu0 0
      %647 = vmatpush1.bf16.msra.mxu0 0
      %648 = vmatprep.subr.bf16.mxu0 0
      %649 = vmatpush1.bf16.msra.mxu0 0
      %650 = vmatprep.subr.bf16.mxu0 0
      %651 = vmatpush1.bf16.msra.mxu0 0
      %652 = vmatprep.subr.bf16.mxu0 0
      %653 = vmatpush1.bf16.msra.mxu0 0
      %654 = vmatprep.subr.bf16.mxu0 0
      %655 = vmatpush1.bf16.msra.mxu0 0
      %656 = vmatprep.subr.bf16.mxu0 0
      %657 = vmatpush1.bf16.msra.mxu0 0
      %658 = vmatprep.subr.bf16.mxu0 0
      %659 = vmatpush1.bf16.msra.mxu0 0
      %660 = vmatprep.subr.bf16.mxu0 0
      %661 = vmatpush1.bf16.msra.mxu0 0
      %662 = vmatprep.subr.bf16.mxu0 0
      %663 = vmatpush1.bf16.msra.mxu0 0
      %664 = vmatprep.subr.bf16.mxu0 0
      %665 = vmatpush1.bf16.msra.mxu0 0
      %666 = vmatprep.mubr.bf16.mxu0 0
      %667 = vmatmul.mubr.bf16.gmra.mrb[0].mxu0 %v626
      %v668 = vpop.f32.mrb[0].mxu0
      %v669 = vadd.f32 0.0, %v668
      %v670 = vpop.f32.mrb[0].mxu0
      %v671 = vadd.f32 0.0, %v670
      %v672 = vpop.f32.mrb[0].mxu0
      %v673 = vpop.f32.mrb[0].mxu0
      %674 = vdwg.mxu0
      %v675 = vadd.f32 %v619, %v669
      %v676 = vadd.f32 %v620, %v671
      %677 = vrot.lane.b32.xlu0 %v307, 127
      %v678 = vpop.permute.xlu0 %677
      %679 = vrot.lane.b32.xlu0 %v309, 127
      %v680 = vpop.permute.xlu0 %679
      %vm681 = vcmp.lt.s32.totalorder %v316, 127
      %v682 = vsel %vm681, %v678, %v680
      %v683 = vsel %vm681, %v680, %v678
      %s684 = scalar_lea.vmem %s0, 10
      %v685 = vld [vmem:[%s684] sm:$0x3]
      %v687 = vlaneseq
      %v688 = vshrl.u32 %v687, 7
      %v689 = vsub.s32 0, %v688
      %v690 = vrot.slane %v685, %v689
      %v691 = vlaneseq
      %v692 = vshrl.u32 %v691, 7
      %v693 = vsub.s32 1, %v692
      %v694 = vrot.slane %v685, %v693
      %v697 = vmul.f32 %v682, %v690
      %v698 = vmul.f32 %v683, %v694
      %s699 = scalar_lea.vmem %s2, 10
      %v700 = vld [vmem:[%s699] sm:$0x3]
      %v701 = vpack.c.bf16 %v697, %v697
      %v702 = vpack.c.bf16 %v698, %v698
      %v704 = vsel %vm363, %v700, 0
      %v707 = vsel %vm367, %v701, 0
      %v710 = vsel %vm367, %v702, 0
      %712 = vmatprep.subr.bf16.mxu0 %v710
      %713 = vmatpush1.bf16.msra.mxu0 %v707
      %714 = vmatprep.subr.bf16.mxu0 0
      %715 = vmatpush1.bf16.msra.mxu0 0
      %716 = vmatprep.subr.bf16.mxu0 0
      %717 = vmatpush1.bf16.msra.mxu0 0
      %718 = vmatprep.subr.bf16.mxu0 0
      %719 = vmatpush1.bf16.msra.mxu0 0
      %720 = vmatprep.subr.bf16.mxu0 0
      %721 = vmatpush1.bf16.msra.mxu0 0
      %722 = vmatprep.subr.bf16.mxu0 0
      %723 = vmatpush1.bf16.msra.mxu0 0
      %724 = vmatprep.subr.bf16.mxu0 0
      %725 = vmatpush1.bf16.msra.mxu0 0
      %726 = vmatprep.subr.bf16.mxu0 0
      %727 = vmatpush1.bf16.msra.mxu0 0
      %728 = vmatprep.subr.bf16.mxu0 0
      %729 = vmatpush1.bf16.msra.mxu0 0
      %730 = vmatprep.subr.bf16.mxu0 0
      %731 = vmatpush1.bf16.msra.mxu0 0
      %732 = vmatprep.subr.bf16.mxu0 0
      %733 = vmatpush1.bf16.msra.mxu0 0
      %734 = vmatprep.subr.bf16.mxu0 0
      %735 = vmatpush1.bf16.msra.mxu0 0
      %736 = vmatprep.subr.bf16.mxu0 0
      %737 = vmatpush1.bf16.msra.mxu0 0
      %738 = vmatprep.subr.bf16.mxu0 0
      %739 = vmatpush1.bf16.msra.mxu0 0
      %740 = vmatprep.subr.bf16.mxu0 0
      %741 = vmatpush1.bf16.msra.mxu0 0
      %742 = vmatprep.subr.bf16.mxu0 0
      %743 = vmatpush1.bf16.msra.mxu0 0
      %744 = vmatprep.mubr.bf16.mxu0 0
      %745 = vmatmul.mubr.bf16.gmra.mrb[0].mxu0 %v704
      %v746 = vpop.f32.mrb[0].mxu0
      %v747 = vadd.f32 0.0, %v746
      %v748 = vpop.f32.mrb[0].mxu0
      %v749 = vadd.f32 0.0, %v748
      %v750 = vpop.f32.mrb[0].mxu0
      %v751 = vpop.f32.mrb[0].mxu0
      %752 = vdwg.mxu0
      %v753 = vadd.f32 %v675, %v747
      %v754 = vadd.f32 %v676, %v749
      %755 = vrot.lane.b32.xlu0 %v307, 113
      %v756 = vpop.permute.xlu0 %755
      %757 = vrot.lane.b32.xlu0 %v309, 113
      %v758 = vpop.permute.xlu0 %757
      %vm759 = vcmp.lt.s32.totalorder %v316, 113
      %v760 = vsel %vm759, %v756, %v758
      %v761 = vsel %vm759, %v758, %v756
      %s762 = scalar_lea.vmem %s0, 12
      %v763 = vld [vmem:[%s762] sm:$0x3]
      %v765 = vlaneseq
      %v766 = vshrl.u32 %v765, 7
      %v767 = vsub.s32 0, %v766
      %v768 = vrot.slane %v763, %v767
      %v769 = vlaneseq
      %v770 = vshrl.u32 %v769, 7
      %v771 = vsub.s32 1, %v770
      %v772 = vrot.slane %v763, %v771
      %v775 = vmul.f32 %v760, %v768
      %v776 = vmul.f32 %v761, %v772
      %s777 = scalar_lea.vmem %s2, 12
      %v778 = vld [vmem:[%s777] sm:$0x3]
      %v779 = vpack.c.bf16 %v775, %v775
      %v780 = vpack.c.bf16 %v776, %v776
      %v782 = vsel %vm363, %v778, 0
      %v785 = vsel %vm367, %v779, 0
      %v788 = vsel %vm367, %v780, 0
      %790 = vmatprep.subr.bf16.mxu0 %v788
      %791 = vmatpush1.bf16.msra.mxu0 %v785
      %792 = vmatprep.subr.bf16.mxu0 0
      %793 = vmatpush1.bf16.msra.mxu0 0
      %794 = vmatprep.subr.bf16.mxu0 0
      %795 = vmatpush1.bf16.msra.mxu0 0
      %796 = vmatprep.subr.bf16.mxu0 0
      %797 = vmatpush1.bf16.msra.mxu0 0
      %798 = vmatprep.subr.bf16.mxu0 0
      %799 = vmatpush1.bf16.msra.mxu0 0
      %800 = vmatprep.subr.bf16.mxu0 0
      %801 = vmatpush1.bf16.msra.mxu0 0
      %802 = vmatprep.subr.bf16.mxu0 0
      %803 = vmatpush1.bf16.msra.mxu0 0
      %804 = vmatprep.subr.bf16.mxu0 0
      %805 = vmatpush1.bf16.msra.mxu0 0
      %806 = vmatprep.subr.bf16.mxu0 0
      %807 = vmatpush1.bf16.msra.mxu0 0
      %808 = vmatprep.subr.bf16.mxu0 0
      %809 = vmatpush1.bf16.msra.mxu0 0
      %810 = vmatprep.subr.bf16.mxu0 0
      %811 = vmatpush1.bf16.msra.mxu0 0
      %812 = vmatprep.subr.bf16.mxu0 0
      %813 = vmatpush1.bf16.msra.mxu0 0
      %814 = vmatprep.subr.bf16.mxu0 0
      %815 = vmatpush1.bf16.msra.mxu0 0
      %816 = vmatprep.subr.bf16.mxu0 0
      %817 = vmatpush1.bf16.msra.mxu0 0
      %818 = vmatprep.subr.bf16.mxu0 0
      %819 = vmatpush1.bf16.msra.mxu0 0
      %820 = vmatprep.subr.bf16.mxu0 0
      %821 = vmatpush1.bf16.msra.mxu0 0
      %822 = vmatprep.mubr.bf16.mxu0 0
      %823 = vmatmul.mubr.bf16.gmra.mrb[0].mxu0 %v782
      %v824 = vpop.f32.mrb[0].mxu0
      %v825 = vadd.f32 0.0, %v824
      %v826 = vpop.f32.mrb[0].mxu0
      %v827 = vadd.f32 0.0, %v826
      %v828 = vpop.f32.mrb[0].mxu0
      %v829 = vpop.f32.mrb[0].mxu0
      %830 = vdwg.mxu0
      %v831 = vadd.f32 %v753, %v825
      %v832 = vadd.f32 %v754, %v827
      %833 = vrot.lane.b32.xlu0 %v307, 112
      %v834 = vpop.permute.xlu0 %833
      %835 = vrot.lane.b32.xlu0 %v309, 112
      %v836 = vpop.permute.xlu0 %835
      %vm837 = vcmp.lt.s32.totalorder %v316, 112
      %v838 = vsel %vm837, %v834, %v836
      %v839 = vsel %vm837, %v836, %v834
      %s840 = scalar_lea.vmem %s0, 14
      %v841 = vld [vmem:[%s840] sm:$0x3]
      %v843 = vlaneseq
      %v844 = vshrl.u32 %v843, 7
      %v845 = vsub.s32 0, %v844
      %v846 = vrot.slane %v841, %v845
      %v847 = vlaneseq
      %v848 = vshrl.u32 %v847, 7
      %v849 = vsub.s32 1, %v848
      %v850 = vrot.slane %v841, %v849
      %v853 = vmul.f32 %v838, %v846
      %v854 = vmul.f32 %v839, %v850
      %s855 = scalar_lea.vmem %s2, 14
      %v856 = vld [vmem:[%s855] sm:$0x3]
      %v857 = vpack.c.bf16 %v853, %v853
      %v858 = vpack.c.bf16 %v854, %v854
      %v860 = vsel %vm363, %v856, 0
      %v863 = vsel %vm367, %v857, 0
      %v866 = vsel %vm367, %v858, 0
      %868 = vmatprep.subr.bf16.mxu0 %v866
      %869 = vmatpush1.bf16.msra.mxu0 %v863
      %870 = vmatprep.subr.bf16.mxu0 0
      %871 = vmatpush1.bf16.msra.mxu0 0
      %872 = vmatprep.subr.bf16.mxu0 0
      %873 = vmatpush1.bf16.msra.mxu0 0
      %874 = vmatprep.subr.bf16.mxu0 0
      %875 = vmatpush1.bf16.msra.mxu0 0
      %876 = vmatprep.subr.bf16.mxu0 0
      %877 = vmatpush1.bf16.msra.mxu0 0
      %878 = vmatprep.subr.bf16.mxu0 0
      %879 = vmatpush1.bf16.msra.mxu0 0
      %880 = vmatprep.subr.bf16.mxu0 0
      %881 = vmatpush1.bf16.msra.mxu0 0
      %882 = vmatprep.subr.bf16.mxu0 0
      %883 = vmatpush1.bf16.msra.mxu0 0
      %884 = vmatprep.subr.bf16.mxu0 0
      %885 = vmatpush1.bf16.msra.mxu0 0
      %886 = vmatprep.subr.bf16.mxu0 0
      %887 = vmatpush1.bf16.msra.mxu0 0
      %888 = vmatprep.subr.bf16.mxu0 0
      %889 = vmatpush1.bf16.msra.mxu0 0
      %890 = vmatprep.subr.bf16.mxu0 0
      %891 = vmatpush1.bf16.msra.mxu0 0
      %892 = vmatprep.subr.bf16.mxu0 0
      %893 = vmatpush1.bf16.msra.mxu0 0
      %894 = vmatprep.subr.bf16.mxu0 0
      %895 = vmatpush1.bf16.msra.mxu0 0
      %896 = vmatprep.subr.bf16.mxu0 0
      %897 = vmatpush1.bf16.msra.mxu0 0
      %898 = vmatprep.subr.bf16.mxu0 0
      %899 = vmatpush1.bf16.msra.mxu0 0
      %900 = vmatprep.mubr.bf16.mxu0 0
      %901 = vmatmul.mubr.bf16.gmra.mrb[0].mxu0 %v860
      %v902 = vpop.f32.mrb[0].mxu0
      %v903 = vadd.f32 0.0, %v902
      %v904 = vpop.f32.mrb[0].mxu0
      %v905 = vadd.f32 0.0, %v904
      %v906 = vpop.f32.mrb[0].mxu0
      %v907 = vpop.f32.mrb[0].mxu0
      %908 = vdwg.mxu0
      %v909 = vadd.f32 %v831, %v903
      %v910 = vadd.f32 %v832, %v905
      %911 = vrot.lane.b32.xlu0 %v307, 111
      %v912 = vpop.permute.xlu0 %911
      %913 = vrot.lane.b32.xlu0 %v309, 111
      %v914 = vpop.permute.xlu0 %913
      %vm915 = vcmp.lt.s32.totalorder %v316, 111
      %v916 = vsel %vm915, %v912, %v914
      %v917 = vsel %vm915, %v914, %v912
      %s918 = scalar_lea.vmem %s0, 16
      %v919 = vld [vmem:[%s918] sm:$0x3]
      %v921 = vlaneseq
      %v922 = vshrl.u32 %v921, 7
      %v923 = vsub.s32 0, %v922
      %v924 = vrot.slane %v919, %v923
      %v925 = vlaneseq
      %v926 = vshrl.u32 %v925, 7
      %v927 = vsub.s32 1, %v926
      %v928 = vrot.slane %v919, %v927
      %v931 = vmul.f32 %v916, %v924
      %v932 = vmul.f32 %v917, %v928
      %s933 = scalar_lea.vmem %s2, 16
      %v934 = vld [vmem:[%s933] sm:$0x3]
      %v935 = vpack.c.bf16 %v931, %v931
      %v936 = vpack.c.bf16 %v932, %v932
      %v938 = vsel %vm363, %v934, 0
      %v941 = vsel %vm367, %v935, 0
      %v944 = vsel %vm367, %v936, 0
      %946 = vmatprep.subr.bf16.mxu0 %v944
      %947 = vmatpush1.bf16.msra.mxu0 %v941
      %948 = vmatprep.subr.bf16.mxu0 0
      %949 = vmatpush1.bf16.msra.mxu0 0
      %950 = vmatprep.subr.bf16.mxu0 0
      %951 = vmatpush1.bf16.msra.mxu0 0
      %952 = vmatprep.subr.bf16.mxu0 0
      %953 = vmatpush1.bf16.msra.mxu0 0
      %954 = vmatprep.subr.bf16.mxu0 0
      %955 = vmatpush1.bf16.msra.mxu0 0
      %956 = vmatprep.subr.bf16.mxu0 0
      %957 = vmatpush1.bf16.msra.mxu0 0
      %958 = vmatprep.subr.bf16.mxu0 0
      %959 = vmatpush1.bf16.msra.mxu0 0
      %960 = vmatprep.subr.bf16.mxu0 0
      %961 = vmatpush1.bf16.msra.mxu0 0
      %962 = vmatprep.subr.bf16.mxu0 0
      %963 = vmatpush1.bf16.msra.mxu0 0
      %964 = vmatprep.subr.bf16.mxu0 0
      %965 = vmatpush1.bf16.msra.mxu0 0
      %966 = vmatprep.subr.bf16.mxu0 0
      %967 = vmatpush1.bf16.msra.mxu0 0
      %968 = vmatprep.subr.bf16.mxu0 0
      %969 = vmatpush1.bf16.msra.mxu0 0
      %970 = vmatprep.subr.bf16.mxu0 0
      %971 = vmatpush1.bf16.msra.mxu0 0
      %972 = vmatprep.subr.bf16.mxu0 0
      %973 = vmatpush1.bf16.msra.mxu0 0
      %974 = vmatprep.subr.bf16.mxu0 0
      %975 = vmatpush1.bf16.msra.mxu0 0
      %976 = vmatprep.subr.bf16.mxu0 0
      %977 = vmatpush1.bf16.msra.mxu0 0
      %978 = vmatprep.mubr.bf16.mxu0 0
      %979 = vmatmul.mubr.bf16.gmra.mrb[0].mxu0 %v938
      %v980 = vpop.f32.mrb[0].mxu0
      %v981 = vadd.f32 0.0, %v980
      %v982 = vpop.f32.mrb[0].mxu0
      %v983 = vadd.f32 0.0, %v982
      %v984 = vpop.f32.mrb[0].mxu0
      %v985 = vpop.f32.mrb[0].mxu0
      %986 = vdwg.mxu0
      %v987 = vadd.f32 %v909, %v981
      %v988 = vadd.f32 %v910, %v983
      %v989 = vld [vmem:[%s3] sm:$0xf]
      %991 = vset.pattern.permute.xlu0 0
      %992 = vperm.xlu0 %991, %v989
      %v993 = vpop.permute.xlu0 %992
      %v995 = vmul.f32 %v987, %v993
      %v996 = vmul.f32 %v988, %v993
      %v997 = vld [vmem:[%s4] sm:$0xf]
      %999 = vset.pattern.permute.xlu0 0
      %1000 = vperm.xlu0 %999, %v997
      %v1001 = vpop.permute.xlu0 %1000
      %v1003 = vadd.f32 %v995, %v1001
      %v1004 = vadd.f32 %v996, %v1001
      %v1005 = vmax.f32 %v1003, 0.0
      %v1006 = vmax.f32 %v1004, 0.0
      %v1009 = vcombine.low %v1005, %v1006
      %1011 = vst [vmem:[#allocation2] sm:$0xff] %v1009
      %v1012 = vld [vmem:[#allocation2] sm:$0xff]
      %v1014 = vcombine.high %v1012, %v1012
      %1016 = vrot.lane.b32.xlu0 %v1012, 17
      %v1017 = vpop.permute.xlu0 %1016
      %1018 = vrot.lane.b32.xlu0 %v1014, 17
      %v1019 = vpop.permute.xlu0 %1018
      %v1020 = vsel %vm317, %v1017, %v1019
      %v1021 = vsel %vm317, %v1019, %v1017
      %v1022 = vld [vmem:[%s0] sm:$0x3]
      %v1024 = vlaneseq
      %v1025 = vshrl.u32 %v1024, 7
      %v1026 = vsub.s32 0, %v1025
      %v1027 = vrot.slane %v1022, %v1026
      %v1028 = vlaneseq
      %v1029 = vshrl.u32 %v1028, 7
      %v1030 = vsub.s32 1, %v1029
      %v1031 = vrot.slane %v1022, %v1030
      %v1034 = vmul.f32 %v1021, %v1027
      %v1035 = vmul.f32 %v1020, %v1031
      %v1036 = vld [vmem:[%s5] sm:$0x3]
      %v1037 = vpack.c.bf16 %v1034, %v1034
      %v1038 = vpack.c.bf16 %v1035, %v1035
      %1039 = vrot.lane.b32.xlu0 %v1012, 16
      %v1040 = vpop.permute.xlu0 %1039
      %1041 = vrot.lane.b32.xlu0 %v1014, 16
      %v1042 = vpop.permute.xlu0 %1041
      %v1043 = vsel %vm341, %v1040, %v1042
      %v1044 = vsel %vm341, %v1042, %v1040
      %v1045 = vld [vmem:[%s344] sm:$0x3]
      %v1047 = vlaneseq
      %v1048 = vshrl.u32 %v1047, 7
      %v1049 = vsub.s32 0, %v1048
      %v1050 = vrot.slane %v1045, %v1049
      %v1051 = vlaneseq
      %v1052 = vshrl.u32 %v1051, 7
      %v1053 = vsub.s32 1, %v1052
      %v1054 = vrot.slane %v1045, %v1053
      %v1057 = vmul.f32 %v1044, %v1050
      %v1058 = vmul.f32 %v1043, %v1054
      %s1059 = scalar_lea.vmem %s5, 2
      %v1060 = vld [vmem:[%s1059] sm:$0x3]
      %v1061 = vpack.c.bf16 %v1057, %v1057
      %v1062 = vpack.c.bf16 %v1058, %v1058
      %v1064 = vsel %vm363, %v1060, 0
      %v1067 = vsel %vm367, %v1061, 0
      %v1070 = vsel %vm367, %v1062, 0
      %1072 = vmatprep.subr.bf16.mxu0 %v1070
      %1073 = vmatpush1.bf16.msra.mxu0 %v1067
      %1074 = vmatprep.subr.bf16.mxu0 0
      %1075 = vmatpush1.bf16.msra.mxu0 0
      %1076 = vmatprep.subr.bf16.mxu0 0
      %1077 = vmatpush1.bf16.msra.mxu0 0
      %1078 = vmatprep.subr.bf16.mxu0 0
      %1079 = vmatpush1.bf16.msra.mxu0 0
      %1080 = vmatprep.subr.bf16.mxu0 0
      %1081 = vmatpush1.bf16.msra.mxu0 0
      %1082 = vmatprep.subr.bf16.mxu0 0
      %1083 = vmatpush1.bf16.msra.mxu0 0
      %1084 = vmatprep.subr.bf16.mxu0 0
      %1085 = vmatpush1.bf16.msra.mxu0 0
      %1086 = vmatprep.subr.bf16.mxu0 0
      %1087 = vmatpush1.bf16.msra.mxu0 0
      %1088 = vmatprep.subr.bf16.mxu0 0
      %1089 = vmatpush1.bf16.msra.mxu0 0
      %1090 = vmatprep.subr.bf16.mxu0 0
      %1091 = vmatpush1.bf16.msra.mxu0 0
      %1092 = vmatprep.subr.bf16.mxu0 0
      %1093 = vmatpush1.bf16.msra.mxu0 0
      %1094 = vmatprep.subr.bf16.mxu0 0
      %1095 = vmatpush1.bf16.msra.mxu0 0
      %1096 = vmatprep.subr.bf16.mxu0 0
      %1097 = vmatpush1.bf16.msra.mxu0 0
      %1098 = vmatprep.subr.bf16.mxu0 0
      %1099 = vmatpush1.bf16.msra.mxu0 0
      %1100 = vmatprep.subr.bf16.mxu0 0
      %1101 = vmatpush1.bf16.msra.mxu0 0
      %1102 = vmatprep.subr.bf16.mxu0 0
      %1103 = vmatpush1.bf16.msra.mxu0 0
      %1104 = vmatprep.mubr.bf16.mxu0 0
      %1105 = vmatmul.mubr.bf16.gmra.mrb[0].mxu0 %v1064
      %v1106 = vpop.f32.mrb[0].mxu0
      %v1107 = vadd.f32 0.0, %v1106
      %v1108 = vpop.f32.mrb[0].mxu0
      %v1109 = vadd.f32 0.0, %v1108
      %v1110 = vpop.f32.mrb[0].mxu0
      %v1111 = vpop.f32.mrb[0].mxu0
      %1112 = vdwg.mxu0
      %v1114 = vsel %vm363, %v1036, 0
      %v1117 = vsel %vm367, %v1037, 0
      %v1120 = vsel %vm367, %v1038, 0
      %1122 = vmatprep.subr.bf16.mxu0 %v1120
      %1123 = vmatpush1.bf16.msra.mxu0 %v1117
      %1124 = vmatprep.subr.bf16.mxu0 0
      %1125 = vmatpush1.bf16.msra.mxu0 0
      %1126 = vmatprep.subr.bf16.mxu0 0
      %1127 = vmatpush1.bf16.msra.mxu0 0
      %1128 = vmatprep.subr.bf16.mxu0 0
      %1129 = vmatpush1.bf16.msra.mxu0 0
      %1130 = vmatprep.subr.bf16.mxu0 0
      %1131 = vmatpush1.bf16.msra.mxu0 0
      %1132 = vmatprep.subr.bf16.mxu0 0
      %1133 = vmatpush1.bf16.msra.mxu0 0
      %1134 = vmatprep.subr.bf16.mxu0 0
      %1135 = vmatpush1.bf16.msra.mxu0 0
      %1136 = vmatprep.subr.bf16.mxu0 0
      %1137 = vmatpush1.bf16.msra.mxu0 0
      %1138 = vmatprep.subr.bf16.mxu0 0
      %1139 = vmatpush1.bf16.msra.mxu0 0
      %1140 = vmatprep.subr.bf16.mxu0 0
      %1141 = vmatpush1.bf16.msra.mxu0 0
      %1142 = vmatprep.subr.bf16.mxu0 0
      %1143 = vmatpush1.bf16.msra.mxu0 0
      %1144 = vmatprep.subr.bf16.mxu0 0
      %1145 = vmatpush1.bf16.msra.mxu0 0
      %1146 = vmatprep.subr.bf16.mxu0 0
      %1147 = vmatpush1.bf16.msra.mxu0 0
      %1148 = vmatprep.subr.bf16.mxu0 0
      %1149 = vmatpush1.bf16.msra.mxu0 0
      %1150 = vmatprep.subr.bf16.mxu0 0
      %1151 = vmatpush1.bf16.msra.mxu0 0
      %1152 = vmatprep.subr.bf16.mxu0 0
      %1153 = vmatpush1.bf16.msra.mxu0 0
      %1154 = vmatprep.mubr.bf16.mxu0 0
      %1155 = vmatmul.mubr.bf16.gmra.mrb[0].mxu0 %v1114
      %v1156 = vpop.f32.mrb[0].mxu0
      %v1157 = vadd.f32 %v1107, %v1156
      %v1158 = vpop.f32.mrb[0].mxu0
      %v1159 = vadd.f32 %v1109, %v1158
      %v1160 = vpop.f32.mrb[0].mxu0
      %v1161 = vpop.f32.mrb[0].mxu0
      %1162 = vdwg.mxu0
      %1163 = vrot.lane.b32.xlu0 %v1012, 15
      %v1164 = vpop.permute.xlu0 %1163
      %1165 = vrot.lane.b32.xlu0 %v1014, 15
      %v1166 = vpop.permute.xlu0 %1165
      %v1167 = vsel %vm469, %v1164, %v1166
      %v1168 = vsel %vm469, %v1166, %v1164
      %v1169 = vld [vmem:[%s472] sm:$0x3]
      %v1171 = vlaneseq
      %v1172 = vshrl.u32 %v1171, 7
      %v1173 = vsub.s32 0, %v1172
      %v1174 = vrot.slane %v1169, %v1173
      %v1175 = vlaneseq
      %v1176 = vshrl.u32 %v1175, 7
      %v1177 = vsub.s32 1, %v1176
      %v1178 = vrot.slane %v1169, %v1177
      %v1181 = vmul.f32 %v1168, %v1174
      %v1182 = vmul.f32 %v1167, %v1178
      %s1183 = scalar_lea.vmem %s5, 4
      %v1184 = vld [vmem:[%s1183] sm:$0x3]
      %v1185 = vpack.c.bf16 %v1181, %v1181
      %v1186 = vpack.c.bf16 %v1182, %v1182
      %v1188 = vsel %vm363, %v1184, 0
      %v1191 = vsel %vm367, %v1185, 0
      %v1194 = vsel %vm367, %v1186, 0
      %1196 = vmatprep.subr.bf16.mxu0 %v1194
      %1197 = vmatpush1.bf16.msra.mxu0 %v1191
      %1198 = vmatprep.subr.bf16.mxu0 0
      %1199 = vmatpush1.bf16.msra.mxu0 0
      %1200 = vmatprep.subr.bf16.mxu0 0
      %1201 = vmatpush1.bf16.msra.mxu0 0
      %1202 = vmatprep.subr.bf16.mxu0 0
      %1203 = vmatpush1.bf16.msra.mxu0 0
      %1204 = vmatprep.subr.bf16.mxu0 0
      %1205 = vmatpush1.bf16.msra.mxu0 0
      %1206 = vmatprep.subr.bf16.mxu0 0
      %1207 = vmatpush1.bf16.msra.mxu0 0
      %1208 = vmatprep.subr.bf16.mxu0 0
      %1209 = vmatpush1.bf16.msra.mxu0 0
      %1210 = vmatprep.subr.bf16.mxu0 0
      %1211 = vmatpush1.bf16.msra.mxu0 0
      %1212 = vmatprep.subr.bf16.mxu0 0
      %1213 = vmatpush1.bf16.msra.mxu0 0
      %1214 = vmatprep.subr.bf16.mxu0 0
      %1215 = vmatpush1.bf16.msra.mxu0 0
      %1216 = vmatprep.subr.bf16.mxu0 0
      %1217 = vmatpush1.bf16.msra.mxu0 0
      %1218 = vmatprep.subr.bf16.mxu0 0
      %1219 = vmatpush1.bf16.msra.mxu0 0
      %1220 = vmatprep.subr.bf16.mxu0 0
      %1221 = vmatpush1.bf16.msra.mxu0 0
      %1222 = vmatprep.subr.bf16.mxu0 0
      %1223 = vmatpush1.bf16.msra.mxu0 0
      %1224 = vmatprep.subr.bf16.mxu0 0
      %1225 = vmatpush1.bf16.msra.mxu0 0
      %1226 = vmatprep.subr.bf16.mxu0 0
      %1227 = vmatpush1.bf16.msra.mxu0 0
      %1228 = vmatprep.mubr.bf16.mxu0 0
      %1229 = vmatmul.mubr.bf16.gmra.mrb[0].mxu0 %v1188
      %v1230 = vpop.f32.mrb[0].mxu0
      %v1231 = vadd.f32 0.0, %v1230
      %v1232 = vpop.f32.mrb[0].mxu0
      %v1233 = vadd.f32 0.0, %v1232
      %v1234 = vpop.f32.mrb[0].mxu0
      %v1235 = vpop.f32.mrb[0].mxu0
      %1236 = vdwg.mxu0
      %v1237 = vadd.f32 %v1157, %v1231
      %v1238 = vadd.f32 %v1159, %v1233
      %1239 = vrot.lane.b32.xlu0 %v1012, 1
      %v1240 = vpop.permute.xlu0 %1239
      %1241 = vrot.lane.b32.xlu0 %v1014, 1
      %v1242 = vpop.permute.xlu0 %1241
      %v1243 = vsel %vm547, %v1240, %v1242
      %v1244 = vsel %vm547, %v1242, %v1240
      %v1245 = vld [vmem:[%s550] sm:$0x3]
      %v1247 = vlaneseq
      %v1248 = vshrl.u32 %v1247, 7
      %v1249 = vsub.s32 0, %v1248
      %v1250 = vrot.slane %v1245, %v1249
      %v1251 = vlaneseq
      %v1252 = vshrl.u32 %v1251, 7
      %v1253 = vsub.s32 1, %v1252
      %v1254 = vrot.slane %v1245, %v1253
      %v1257 = vmul.f32 %v1244, %v1250
      %v1258 = vmul.f32 %v1243, %v1254
      %s1259 = scalar_lea.vmem %s5, 6
      %v1260 = vld [vmem:[%s1259] sm:$0x3]
      %v1261 = vpack.c.bf16 %v1257, %v1257
      %v1262 = vpack.c.bf16 %v1258, %v1258
      %v1264 = vsel %vm363, %v1260, 0
      %v1267 = vsel %vm367, %v1261, 0
      %v1270 = vsel %vm367, %v1262, 0
      %1272 = vmatprep.subr.bf16.mxu0 %v1270
      %1273 = vmatpush1.bf16.msra.mxu0 %v1267
      %1274 = vmatprep.subr.bf16.mxu0 0
      %1275 = vmatpush1.bf16.msra.mxu0 0
      %1276 = vmatprep.subr.bf16.mxu0 0
      %1277 = vmatpush1.bf16.msra.mxu0 0
      %1278 = vmatprep.subr.bf16.mxu0 0
      %1279 = vmatpush1.bf16.msra.mxu0 0
      %1280 = vmatprep.subr.bf16.mxu0 0
      %1281 = vmatpush1.bf16.msra.mxu0 0
      %1282 = vmatprep.subr.bf16.mxu0 0
      %1283 = vmatpush1.bf16.msra.mxu0 0
      %1284 = vmatprep.subr.bf16.mxu0 0
      %1285 = vmatpush1.bf16.msra.mxu0 0
      %1286 = vmatprep.subr.bf16.mxu0 0
      %1287 = vmatpush1.bf16.msra.mxu0 0
      %1288 = vmatprep.subr.bf16.mxu0 0
      %1289 = vmatpush1.bf16.msra.mxu0 0
      %1290 = vmatprep.subr.bf16.mxu0 0
      %1291 = vmatpush1.bf16.msra.mxu0 0
      %1292 = vmatprep.subr.bf16.mxu0 0
      %1293 = vmatpush1.bf16.msra.mxu0 0
      %1294 = vmatprep.subr.bf16.mxu0 0
      %1295 = vmatpush1.bf16.msra.mxu0 0
      %1296 = vmatprep.subr.bf16.mxu0 0
      %1297 = vmatpush1.bf16.msra.mxu0 0
      %1298 = vmatprep.subr.bf16.mxu0 0
      %1299 = vmatpush1.bf16.msra.mxu0 0
      %1300 = vmatprep.subr.bf16.mxu0 0
      %1301 = vmatpush1.bf16.msra.mxu0 0
      %1302 = vmatprep.subr.bf16.mxu0 0
      %1303 = vmatpush1.bf16.msra.mxu0 0
      %1304 = vmatprep.mubr.bf16.mxu0 0
      %1305 = vmatmul.mubr.bf16.gmra.mrb[0].mxu0 %v1264
      %v1306 = vpop.f32.mrb[0].mxu0
      %v1307 = vadd.f32 0.0, %v1306
      %v1308 = vpop.f32.mrb[0].mxu0
      %v1309 = vadd.f32 0.0, %v1308
      %v1310 = vpop.f32.mrb[0].mxu0
      %v1311 = vpop.f32.mrb[0].mxu0
      %1312 = vdwg.mxu0
      %v1313 = vadd.f32 %v1237, %v1307
      %v1314 = vadd.f32 %v1238, %v1309
      %s1315 = scalar_lea.vmem %s5, 8
      %v1316 = vld [vmem:[%s1315] sm:$0x3]
      %v1317 = vpack.c.bf16 %v1012, %v1012
      %v1318 = vpack.c.bf16 %v1014, %v1014
      %v1320 = vsel %vm363, %v1316, 0
      %v1323 = vsel %vm367, %v1317, 0
      %v1326 = vsel %vm367, %v1318, 0
      %1328 = vmatprep.subr.bf16.mxu0 %v1326
      %1329 = vmatpush1.bf16.msra.mxu0 %v1323
      %1330 = vmatprep.subr.bf16.mxu0 0
      %1331 = vmatpush1.bf16.msra.mxu0 0
      %1332 = vmatprep.subr.bf16.mxu0 0
      %1333 = vmatpush1.bf16.msra.mxu0 0
      %1334 = vmatprep.subr.bf16.mxu0 0
      %1335 = vmatpush1.bf16.msra.mxu0 0
      %1336 = vmatprep.subr.bf16.mxu0 0
      %1337 = vmatpush1.bf16.msra.mxu0 0
      %1338 = vmatprep.subr.bf16.mxu0 0
      %1339 = vmatpush1.bf16.msra.mxu0 0
      %1340 = vmatprep.subr.bf16.mxu0 0
      %1341 = vmatpush1.bf16.msra.mxu0 0
      %1342 = vmatprep.subr.bf16.mxu0 0
      %1343 = vmatpush1.bf16.msra.mxu0 0
      %1344 = vmatprep.subr.bf16.mxu0 0
      %1345 = vmatpush1.bf16.msra.mxu0 0
      %1346 = vmatprep.subr.bf16.mxu0 0
      %1347 = vmatpush1.bf16.msra.mxu0 0
      %1348 = vmatprep.subr.bf16.mxu0 0
      %1349 = vmatpush1.bf16.msra.mxu0 0
      %1350 = vmatprep.subr.bf16.mxu0 0
      %1351 = vmatpush1.bf16.msra.mxu0 0
      %1352 = vmatprep.subr.bf16.mxu0 0
      %1353 = vmatpush1.bf16.msra.mxu0 0
      %1354 = vmatprep.subr.bf16.mxu0 0
      %1355 = vmatpush1.bf16.msra.mxu0 0
      %1356 = vmatprep.subr.bf16.mxu0 0
      %1357 = vmatpush1.bf16.msra.mxu0 0
      %1358 = vmatprep.subr.bf16.mxu0 0
      %1359 = vmatpush1.bf16.msra.mxu0 0
      %1360 = vmatprep.mubr.bf16.mxu0 0
      %1361 = vmatmul.mubr.bf16.gmra.mrb[0].mxu0 %v1320
      %v1362 = vpop.f32.mrb[0].mxu0
      %v1363 = vadd.f32 0.0, %v1362
      %v1364 = vpop.f32.mrb[0].mxu0
      %v1365 = vadd.f32 0.0, %v1364
      %v1366 = vpop.f32.mrb[0].mxu0
      %v1367 = vpop.f32.mrb[0].mxu0
      %1368 = vdwg.mxu0
      %v1369 = vadd.f32 %v1313, %v1363
      %v1370 = vadd.f32 %v1314, %v1365
      %1371 = vrot.lane.b32.xlu0 %v1012, 127
      %v1372 = vpop.permute.xlu0 %1371
      %1373 = vrot.lane.b32.xlu0 %v1014, 127
      %v1374 = vpop.permute.xlu0 %1373
      %v1375 = vsel %vm681, %v1372, %v1374
      %v1376 = vsel %vm681, %v1374, %v1372
      %v1377 = vld [vmem:[%s684] sm:$0x3]
      %v1379 = vlaneseq
      %v1380 = vshrl.u32 %v1379, 7
      %v1381 = vsub.s32 0, %v1380
      %v1382 = vrot.slane %v1377, %v1381
      %v1383 = vlaneseq
      %v1384 = vshrl.u32 %v1383, 7
      %v1385 = vsub.s32 1, %v1384
      %v1386 = vrot.slane %v1377, %v1385
      %v1389 = vmul.f32 %v1375, %v1382
      %v1390 = vmul.f32 %v1376, %v1386
      %s1391 = scalar_lea.vmem %s5, 10
      %v1392 = vld [vmem:[%s1391] sm:$0x3]
      %v1393 = vpack.c.bf16 %v1389, %v1389
      %v1394 = vpack.c.bf16 %v1390, %v1390
      %v1396 = vsel %vm363, %v1392, 0
      %v1399 = vsel %vm367, %v1393, 0
      %v1402 = vsel %vm367, %v1394, 0
      %1404 = vmatprep.subr.bf16.mxu0 %v1402
      %1405 = vmatpush1.bf16.msra.mxu0 %v1399
      %1406 = vmatprep.subr.bf16.mxu0 0
      %1407 = vmatpush1.bf16.msra.mxu0 0
      %1408 = vmatprep.subr.bf16.mxu0 0
      %1409 = vmatpush1.bf16.msra.mxu0 0
      %1410 = vmatprep.subr.bf16.mxu0 0
      %1411 = vmatpush1.bf16.msra.mxu0 0
      %1412 = vmatprep.subr.bf16.mxu0 0
      %1413 = vmatpush1.bf16.msra.mxu0 0
      %1414 = vmatprep.subr.bf16.mxu0 0
      %1415 = vmatpush1.bf16.msra.mxu0 0
      %1416 = vmatprep.subr.bf16.mxu0 0
      %1417 = vmatpush1.bf16.msra.mxu0 0
      %1418 = vmatprep.subr.bf16.mxu0 0
      %1419 = vmatpush1.bf16.msra.mxu0 0
      %1420 = vmatprep.subr.bf16.mxu0 0
      %1421 = vmatpush1.bf16.msra.mxu0 0
      %1422 = vmatprep.subr.bf16.mxu0 0
      %1423 = vmatpush1.bf16.msra.mxu0 0
      %1424 = vmatprep.subr.bf16.mxu0 0
      %1425 = vmatpush1.bf16.msra.mxu0 0
      %1426 = vmatprep.subr.bf16.mxu0 0
      %1427 = vmatpush1.bf16.msra.mxu0 0
      %1428 = vmatprep.subr.bf16.mxu0 0
      %1429 = vmatpush1.bf16.msra.mxu0 0
      %1430 = vmatprep.subr.bf16.mxu0 0
      %1431 = vmatpush1.bf16.msra.mxu0 0
      %1432 = vmatprep.subr.bf16.mxu0 0
      %1433 = vmatpush1.bf16.msra.mxu0 0
      %1434 = vmatprep.subr.bf16.mxu0 0
      %1435 = vmatpush1.bf16.msra.mxu0 0
      %1436 = vmatprep.mubr.bf16.mxu0 0
      %1437 = vmatmul.mubr.bf16.gmra.mrb[0].mxu0 %v1396
      %v1438 = vpop.f32.mrb[0].mxu0
      %v1439 = vadd.f32 0.0, %v1438
      %v1440 = vpop.f32.mrb[0].mxu0
      %v1441 = vadd.f32 0.0, %v1440
      %v1442 = vpop.f32.mrb[0].mxu0
      %v1443 = vpop.f32.mrb[0].mxu0
      %1444 = vdwg.mxu0
      %v1445 = vadd.f32 %v1369, %v1439
      %v1446 = vadd.f32 %v1370, %v1441
      %1447 = vrot.lane.b32.xlu0 %v1012, 113
      %v1448 = vpop.permute.xlu0 %1447
      %1449 = vrot.lane.b32.xlu0 %v1014, 113
      %v1450 = vpop.permute.xlu0 %1449
      %v1451 = vsel %vm759, %v1448, %v1450
      %v1452 = vsel %vm759, %v1450, %v1448
      %v1453 = vld [vmem:[%s762] sm:$0x3]
      %v1455 = vlaneseq
      %v1456 = vshrl.u32 %v1455, 7
      %v1457 = vsub.s32 0, %v1456
      %v1458 = vrot.slane %v1453, %v1457
      %v1459 = vlaneseq
      %v1460 = vshrl.u32 %v1459, 7
      %v1461 = vsub.s32 1, %v1460
      %v1462 = vrot.slane %v1453, %v1461
      %v1465 = vmul.f32 %v1451, %v1458
      %v1466 = vmul.f32 %v1452, %v1462
      %s1467 = scalar_lea.vmem %s5, 12
      %v1468 = vld [vmem:[%s1467] sm:$0x3]
      %v1469 = vpack.c.bf16 %v1465, %v1465
      %v1470 = vpack.c.bf16 %v1466, %v1466
      %v1472 = vsel %vm363, %v1468, 0
      %v1475 = vsel %vm367, %v1469, 0
      %v1478 = vsel %vm367, %v1470, 0
      %1480 = vmatprep.subr.bf16.mxu0 %v1478
      %1481 = vmatpush1.bf16.msra.mxu0 %v1475
      %1482 = vmatprep.subr.bf16.mxu0 0
      %1483 = vmatpush1.bf16.msra.mxu0 0
      %1484 = vmatprep.subr.bf16.mxu0 0
      %1485 = vmatpush1.bf16.msra.mxu0 0
      %1486 = vmatprep.subr.bf16.mxu0 0
      %1487 = vmatpush1.bf16.msra.mxu0 0
      %1488 = vmatprep.subr.bf16.mxu0 0
      %1489 = vmatpush1.bf16.msra.mxu0 0
      %1490 = vmatprep.subr.bf16.mxu0 0
      %1491 = vmatpush1.bf16.msra.mxu0 0
      %1492 = vmatprep.subr.bf16.mxu0 0
      %1493 = vmatpush1.bf16.msra.mxu0 0
      %1494 = vmatprep.subr.bf16.mxu0 0
      %1495 = vmatpush1.bf16.msra.mxu0 0
      %1496 = vmatprep.subr.bf16.mxu0 0
      %1497 = vmatpush1.bf16.msra.mxu0 0
      %1498 = vmatprep.subr.bf16.mxu0 0
      %1499 = vmatpush1.bf16.msra.mxu0 0
      %1500 = vmatprep.subr.bf16.mxu0 0
      %1501 = vmatpush1.bf16.msra.mxu0 0
      %1502 = vmatprep.subr.bf16.mxu0 0
      %1503 = vmatpush1.bf16.msra.mxu0 0
      %1504 = vmatprep.subr.bf16.mxu0 0
      %1505 = vmatpush1.bf16.msra.mxu0 0
      %1506 = vmatprep.subr.bf16.mxu0 0
      %1507 = vmatpush1.bf16.msra.mxu0 0
      %1508 = vmatprep.subr.bf16.mxu0 0
      %1509 = vmatpush1.bf16.msra.mxu0 0
      %1510 = vmatprep.subr.bf16.mxu0 0
      %1511 = vmatpush1.bf16.msra.mxu0 0
      %1512 = vmatprep.mubr.bf16.mxu0 0
      %1513 = vmatmul.mubr.bf16.gmra.mrb[0].mxu0 %v1472
      %v1514 = vpop.f32.mrb[0].mxu0
      %v1515 = vadd.f32 0.0, %v1514
      %v1516 = vpop.f32.mrb[0].mxu0
      %v1517 = vadd.f32 0.0, %v1516
      %v1518 = vpop.f32.mrb[0].mxu0
      %v1519 = vpop.f32.mrb[0].mxu0
      %1520 = vdwg.mxu0
      %v1521 = vadd.f32 %v1445, %v1515
      %v1522 = vadd.f32 %v1446, %v1517
      %1523 = vrot.lane.b32.xlu0 %v1012, 112
      %v1524 = vpop.permute.xlu0 %1523
      %1525 = vrot.lane.b32.xlu0 %v1014, 112
      %v1526 = vpop.permute.xlu0 %1525
      %v1527 = vsel %vm837, %v1524, %v1526
      %v1528 = vsel %vm837, %v1526, %v1524
      %v1529 = vld [vmem:[%s840] sm:$0x3]
      %v1531 = vlaneseq
      %v1532 = vshrl.u32 %v1531, 7
      %v1533 = vsub.s32 0, %v1532
      %v1534 = vrot.slane %v1529, %v1533
      %v1535 = vlaneseq
      %v1536 = vshrl.u32 %v1535, 7
      %v1537 = vsub.s32 1, %v1536
      %v1538 = vrot.slane %v1529, %v1537
      %v1541 = vmul.f32 %v1527, %v1534
      %v1542 = vmul.f32 %v1528, %v1538
      %s1543 = scalar_lea.vmem %s5, 14
      %v1544 = vld [vmem:[%s1543] sm:$0x3]
      %v1545 = vpack.c.bf16 %v1541, %v1541
      %v1546 = vpack.c.bf16 %v1542, %v1542
      %v1548 = vsel %vm363, %v1544, 0
      %v1551 = vsel %vm367, %v1545, 0
      %v1554 = vsel %vm367, %v1546, 0
      %1556 = vmatprep.subr.bf16.mxu0 %v1554
      %1557 = vmatpush1.bf16.msra.mxu0 %v1551
      %1558 = vmatprep.subr.bf16.mxu0 0
      %1559 = vmatpush1.bf16.msra.mxu0 0
      %1560 = vmatprep.subr.bf16.mxu0 0
      %1561 = vmatpush1.bf16.msra.mxu0 0
      %1562 = vmatprep.subr.bf16.mxu0 0
      %1563 = vmatpush1.bf16.msra.mxu0 0
      %1564 = vmatprep.subr.bf16.mxu0 0
      %1565 = vmatpush1.bf16.msra.mxu0 0
      %1566 = vmatprep.subr.bf16.mxu0 0
      %1567 = vmatpush1.bf16.msra.mxu0 0
      %1568 = vmatprep.subr.bf16.mxu0 0
      %1569 = vmatpush1.bf16.msra.mxu0 0
      %1570 = vmatprep.subr.bf16.mxu0 0
      %1571 = vmatpush1.bf16.msra.mxu0 0
      %1572 = vmatprep.subr.bf16.mxu0 0
      %1573 = vmatpush1.bf16.msra.mxu0 0
      %1574 = vmatprep.subr.bf16.mxu0 0
      %1575 = vmatpush1.bf16.msra.mxu0 0
      %1576 = vmatprep.subr.bf16.mxu0 0
      %1577 = vmatpush1.bf16.msra.mxu0 0
      %1578 = vmatprep.subr.bf16.mxu0 0
      %1579 = vmatpush1.bf16.msra.mxu0 0
      %1580 = vmatprep.subr.bf16.mxu0 0
      %1581 = vmatpush1.bf16.msra.mxu0 0
      %1582 = vmatprep.subr.bf16.mxu0 0
      %1583 = vmatpush1.bf16.msra.mxu0 0
      %1584 = vmatprep.subr.bf16.mxu0 0
      %1585 = vmatpush1.bf16.msra.mxu0 0
      %1586 = vmatprep.subr.bf16.mxu0 0
      %1587 = vmatpush1.bf16.msra.mxu0 0
      %1588 = vmatprep.mubr.bf16.mxu0 0
      %1589 = vmatmul.mubr.bf16.gmra.mrb[0].mxu0 %v1548
      %v1590 = vpop.f32.mrb[0].mxu0
      %v1591 = vadd.f32 0.0, %v1590
      %v1592 = vpop.f32.mrb[0].mxu0
      %v1593 = vadd.f32 0.0, %v1592
      %v1594 = vpop.f32.mrb[0].mxu0
      %v1595 = vpop.f32.mrb[0].mxu0
      %1596 = vdwg.mxu0
      %v1597 = vadd.f32 %v1521, %v1591
      %v1598 = vadd.f32 %v1522, %v1593
      %1599 = vrot.lane.b32.xlu0 %v1012, 111
      %v1600 = vpop.permute.xlu0 %1599
      %1601 = vrot.lane.b32.xlu0 %v1014, 111
      %v1602 = vpop.permute.xlu0 %1601
      %v1603 = vsel %vm915, %v1600, %v1602
      %v1604 = vsel %vm915, %v1602, %v1600
      %v1605 = vld [vmem:[%s918] sm:$0x3]
      %v1607 = vlaneseq
      %v1608 = vshrl.u32 %v1607, 7
      %v1609 = vsub.s32 0, %v1608
      %v1610 = vrot.slane %v1605, %v1609
      %v1611 = vlaneseq
      %v1612 = vshrl.u32 %v1611, 7
      %v1613 = vsub.s32 1, %v1612
      %v1614 = vrot.slane %v1605, %v1613
      %v1617 = vmul.f32 %v1603, %v1610
      %v1618 = vmul.f32 %v1604, %v1614
      %s1619 = scalar_lea.vmem %s5, 16
      %v1620 = vld [vmem:[%s1619] sm:$0x3]
      %v1621 = vpack.c.bf16 %v1617, %v1617
      %v1622 = vpack.c.bf16 %v1618, %v1618
      %v1624 = vsel %vm363, %v1620, 0
      %v1627 = vsel %vm367, %v1621, 0
      %v1630 = vsel %vm367, %v1622, 0
      %1632 = vmatprep.subr.bf16.mxu0 %v1630
      %1633 = vmatpush1.bf16.msra.mxu0 %v1627
      %1634 = vmatprep.subr.bf16.mxu0 0
      %1635 = vmatpush1.bf16.msra.mxu0 0
      %1636 = vmatprep.subr.bf16.mxu0 0
      %1637 = vmatpush1.bf16.msra.mxu0 0
      %1638 = vmatprep.subr.bf16.mxu0 0
      %1639 = vmatpush1.bf16.msra.mxu0 0
      %1640 = vmatprep.subr.bf16.mxu0 0
      %1641 = vmatpush1.bf16.msra.mxu0 0
      %1642 = vmatprep.subr.bf16.mxu0 0
      %1643 = vmatpush1.bf16.msra.mxu0 0
      %1644 = vmatprep.subr.bf16.mxu0 0
      %1645 = vmatpush1.bf16.msra.mxu0 0
      %1646 = vmatprep.subr.bf16.mxu0 0
      %1647 = vmatpush1.bf16.msra.mxu0 0
      %1648 = vmatprep.subr.bf16.mxu0 0
      %1649 = vmatpush1.bf16.msra.mxu0 0
      %1650 = vmatprep.subr.bf16.mxu0 0
      %1651 = vmatpush1.bf16.msra.mxu0 0
      %1652 = vmatprep.subr.bf16.mxu0 0
      %1653 = vmatpush1.bf16.msra.mxu0 0
      %1654 = vmatprep.subr.bf16.mxu0 0
      %1655 = vmatpush1.bf16.msra.mxu0 0
      %1656 = vmatprep.subr.bf16.mxu0 0
      %1657 = vmatpush1.bf16.msra.mxu0 0
      %1658 = vmatprep.subr.bf16.mxu0 0
      %1659 = vmatpush1.bf16.msra.mxu0 0
      %1660 = vmatprep.subr.bf16.mxu0 0
      %1661 = vmatpush1.bf16.msra.mxu0 0
      %1662 = vmatprep.subr.bf16.mxu0 0
      %1663 = vmatpush1.bf16.msra.mxu0 0
      %1664 = vmatprep.mubr.bf16.mxu0 0
      %1665 = vmatmul.mubr.bf16.gmra.mrb[0].mxu0 %v1624
      %v1666 = vpop.f32.mrb[0].mxu0
      %v1667 = vadd.f32 0.0, %v1666
      %v1668 = vpop.f32.mrb[0].mxu0
      %v1669 = vadd.f32 0.0, %v1668
      %v1670 = vpop.f32.mrb[0].mxu0
      %v1671 = vpop.f32.mrb[0].mxu0
      %1672 = vdwg.mxu0
      %v1673 = vadd.f32 %v1597, %v1667
      %v1674 = vadd.f32 %v1598, %v1669
      %v1675 = vld [vmem:[%s6] sm:$0xf]
      %1677 = vset.pattern.permute.xlu0 0
      %1678 = vperm.xlu0 %1677, %v1675
      %v1679 = vpop.permute.xlu0 %1678
      %v1681 = vmul.f32 %v1673, %v1679
      %v1682 = vmul.f32 %v1674, %v1679
      %v1683 = vld [vmem:[%s7] sm:$0xf]
      %1685 = vset.pattern.permute.xlu0 0
      %1686 = vperm.xlu0 %1685, %v1683
      %v1687 = vpop.permute.xlu0 %1686
      %v1689 = vadd.f32 %v1681, %v1687
      %v1690 = vadd.f32 %v1682, %v1687
      %v1691 = vld [vmem:[%s300] sm:$0xff]
      %v1693 = vcombine.high %v1691, %v1691
      %v1695 = vadd.f32 %v1689, %v1691
      %v1696 = vadd.f32 %v1690, %v1693
      %v1697 = vmax.f32 %v1695, 0.0
      %v1698 = vmax.f32 %v1696, 0.0
      %v1701 = vcombine.low %v1697, %v1698
      %1703 = vst [vmem:[%s305] sm:$0xff] %v1701
      %p1704 = scmp.lt.s32.totalorder %s19, 1
      %s1705 = scalar_select %p1704, %s19, 1
      %s1706 = smul.addr %s1705, 2
      %s1707 = smul.addr %s1706, 4
      %s1708 = scalar_lea.vmem %s8, %s1707
      // Predicated region
      $region53: #{basic_block_forward.1} parent=51 // pred_check
        %p1709 = pneg %p210
      $region54: #{basic_block_forward.1} parent=51 // pred_check_branch
        %1711 = sbr.rel (%p1709) target = $region56
      $region55: #{basic_block_forward.1} parent=51 // pred_region
        _
      $region56: #{basic_block_forward.1} parent=51 // pred_fallthru
        _
    $region52: #{basic_block_forward.1} parent=5 // pred_fallthru
      _
    %p1712 = scmp.le.s32.totalorder 2, %s14
    // Predicated region
    $region57: #{basic_block_forward.1} parent=5 // pred_check
      %p1713 = pneg %p1712
    $region58: #{basic_block_forward.1} parent=5 // pred_check_branch
      %1715 = sbr.rel (%p1713) target = $region60
    $region59: #{basic_block_forward.1} parent=5 // pred_region
      %s1716 = ssub.s32 %s14, 2
      // Predicated region
      $region61: #{basic_block_forward.1} parent=59 // pred_check
        %p1717 = pneg %p216
      $region62: #{basic_block_forward.1} parent=59 // pred_check_branch
        %1719 = sbr.rel (%p1717) target = $region64
      $region63: #{basic_block_forward.1} parent=59 // pred_region
        %p1720 = scmp.lt.s32.totalorder %s20, 1
        %s1721 = scalar_select %p1720, %s20, 1
        %s1722 = smul.addr %s1721, 2
        %s1723 = smul.addr %s1722, 4
        %s1724 = scalar_lea.vmem %s8, %s1723
      $region64: #{basic_block_forward.1} parent=59 // pred_fallthru
        _
    $region60: #{basic_block_forward.1} parent=5 // pred_fallthru
      _
  $region6: #{basic_block_forward.1} parent=0 // loop_footer
    %s18 = sadd.s32 1, %s14
  $region7: #{basic_block_forward.1} parent=0 // loop_footer_branch
    %13 = sbr.rel target = $region3
  $region8: #{basic_block_forward.1} parent=0 // loop_exit
    _

</llo_original>
